<compile_context>
chip_gen: v6e
topology: v6e:2x2x1
jax: 0.10.0
libtpu: 0.0.40
codegen_flags: <defaults>
</compile_context>

<pallas_src>
import functools

import jax
import jax.numpy as jnp
from jax.experimental import pallas as pl
from jax.experimental.pallas import tpu as pltpu


# ---------------- Fused Pallas kernel (the hot path) ----------------

def acnet_fused_kernel(x_ref, wc_ref, bc_ref, w1_ref, b1_ref, wh_ref, bh_ref,
                       out_ref, *, num_actions):
    # x_ref : (TB, C*100)   flattened NCHW input block (compute dtype)
    # wc_ref: (C*100, 1024) conv folded to a dense matrix, cols = pos*16 + oc
    # bc_ref: (1, 1024)     conv bias tiled to that column order (f32)
    # w1_ref: (1024, 128)   fc_hidden weight, rows permuted to pos*16 + oc
    # b1_ref: (1, 128)
    # wh_ref: (128, 128)    [policy | value | zero-pad] fused head weight
    # bh_ref: (1, 128)
    # out_ref:(TB, 128) f32 lane-dense output: cols [0,A)=softmax(policy), col A=value
    x = x_ref[...]

    # conv (as dense matmul) + bias + SiLU, accumulate in f32
    y = jnp.dot(x, wc_ref[...], preferred_element_type=jnp.float32) + bc_ref[...]
    a = y * jax.nn.sigmoid(y)                                  # SiLU

    # fc_hidden + dSiLU
    z = jnp.dot(a.astype(w1_ref.dtype), w1_ref[...],
                preferred_element_type=jnp.float32) + b1_ref[...]
    s = jax.nn.sigmoid(z)
    h = s * (1.0 + z * (1.0 - s))                              # dSiLU

    # fused policy/value heads: one 128-wide MXU pass
    heads = jnp.dot(h.astype(wh_ref.dtype), wh_ref[...],
                    preferred_element_type=jnp.float32) + bh_ref[...]

    # masked softmax over the first `num_actions` columns; value lives in col A
    col = jax.lax.broadcasted_iota(jnp.int32, heads.shape, 1)
    logits = jnp.where(col < num_actions, heads, -jnp.inf)
    m = jnp.max(logits, axis=1, keepdims=True)
    e = jnp.exp(logits - m)                                    # 0 outside policy cols
    probs = e / jnp.sum(e, axis=1, keepdims=True)
    out_ref[...] = jnp.where(col == num_actions, heads, probs)


# ---------------- Weight preparation (done once per forward trace) ----------------

def _round_up(n, m):
    return ((n + m - 1) // m) * m


def build_conv_matrix(conv_w):
    """Fold the 3x3 VALID conv into a dense matrix.

    Row index   = c*100 + hin*10 + win   (flattened NCHW input, 10x10 spatial)
    Column index= (h*8 + w)*16 + oc      (output position-major, channel-minor)
    """
    O, C, KH, KW = conv_w.shape
    o, c, kh, kw, h, w = jnp.meshgrid(
        jnp.arange(O), jnp.arange(C), jnp.arange(KH), jnp.arange(KW),
        jnp.arange(8), jnp.arange(8), indexing="ij")
    rows = c * 100 + (h + kh) * 10 + (w + kw)
    cols = (h * 8 + w) * O + o
    vals = conv_w[o, c, kh, kw]
    return jnp.zeros((C * 100, 64 * O), jnp.float32).at[rows, cols].set(vals)


# ---------------- Wrapper ----------------

def ac_network_forward(x, params, *, compute_dtype=jnp.bfloat16, block_b=256):
    B, C, H, W = x.shape
    assert (H, W) == (10, 10), "MinAtar ACNetwork assumes 10x10 spatial input"
    A = params["pol_w"].shape[0]
    assert A < 128
    Kc = C * 100

    # --- one-time weight folding / permutation (cheap; precompute in production) ---
    wc = build_conv_matrix(params["conv_w"])                        # (Kc, 1024)
    bc = jnp.tile(params["conv_b"], 64).reshape(1, 1024)            # col = pos*16 + oc
    # fc_w is (128, 1024) with input index oc*64 + pos; reorder rows to pos*16 + oc
    w1 = params["fc_w"].reshape(128, 16, 64).transpose(2, 1, 0).reshape(1024, 128)
    b1 = params["fc_b"].reshape(1, 128)
    # fused [policy | value] head, zero-padded to 128 lanes
    wh = jnp.zeros((128, 128), jnp.float32)
    wh = wh.at[:, :A].set(params["pol_w"].T).at[:, A].set(params["val_w"][0])
    bh = jnp.zeros((1, 128), jnp.float32)
    bh = bh.at[0, :A].set(params["pol_b"]).at[0, A].set(params["val_b"][0])

    # --- batch blocking ---
    xf = x.reshape(B, Kc)
    TB = min(block_b, _round_up(B, 8))
    Bp = _round_up(B, TB)
    if Bp != B:
        xf = jnp.pad(xf, ((0, Bp - B), (0, 0)))

    # bf16 matmul operands (f32 accumulation inside the kernel); biases stay f32
    cd = compute_dtype
    xf = xf.astype(cd)
    wc = wc.astype(cd)
    w1 = w1.astype(cd)
    wh = wh.astype(cd)

    resident = lambda i: (0, 0)   # weights/biases: same block every grid step
    out = pl.pallas_call(
        functools.partial(acnet_fused_kernel, num_actions=A),
        out_shape=jax.ShapeDtypeStruct((Bp, 128), jnp.float32),
        grid_spec=pltpu.PrefetchScalarGridSpec(
            num_scalar_prefetch=0,
            grid=(Bp // TB,),
            in_specs=[
                pl.BlockSpec((TB, Kc), lambda i: (i, 0)),
                pl.BlockSpec((Kc, 1024), resident),
                pl.BlockSpec((1, 1024), resident),
                pl.BlockSpec((1024, 128), resident),
                pl.BlockSpec((1, 128), resident),
                pl.BlockSpec((128, 128), resident),
                pl.BlockSpec((1, 128), resident),
            ],
            out_specs=pl.BlockSpec((TB, 128), lambda i: (i, 0)),
        ),
        compiler_params=pltpu.CompilerParams(
            dimension_semantics=("parallel",),
            vmem_limit_bytes=64 * 1024 * 1024,
        ),
    )(xf, wc, bc, w1, b1, wh, bh)

    policy = out[:B, :A]
    value = out[:B, A:A + 1]
    return policy, value


# ---------------- Deterministic parameter init (PyTorch-like uniform fan-in) ----------------

def init_params(key, in_channels, num_actions):
    ks = jax.random.split(key, 8)

    def u(k, shape, fan_in):
        bound = 1.0 / float(fan_in) ** 0.5
        return jax.random.uniform(k, shape, jnp.float32, -bound, bound)

    conv_fan = in_channels * 9
    return dict(
        conv_w=u(ks[0], (16, in_channels, 3, 3), conv_fan),
        conv_b=u(ks[1], (16,), conv_fan),
        fc_w=u(ks[2], (128, 1024), 1024),
        fc_b=u(ks[3], (128,), 1024),
        pol_w=u(ks[4], (num_actions, 128), 128),
        pol_b=u(ks[5], (num_actions,), 128),
        val_w=u(ks[6], (1, 128), 128),
        val_b=u(ks[7], (1,), 128),
    )


# ---------------- Pure-JAX reference (correctness check only) ----------------

def reference_forward(x, params):
    conv = jax.lax.conv_general_dilated(
        x, params["conv_w"], (1, 1), "VALID",
        dimension_numbers=("NCHW", "OIHW", "NCHW"))
    conv = conv + params["conv_b"][None, :, None, None]
    conv = conv * jax.nn.sigmoid(conv)                          # SiLU
    xf = conv.reshape(conv.shape[0], -1)
    z = xf @ params["fc_w"].T + params["fc_b"]
    s = jax.nn.sigmoid(z)
    h = s * (1.0 + z * (1.0 - s))                               # dSiLU
    logits = h @ params["pol_w"].T + params["pol_b"]
    pol = jax.nn.softmax(logits, axis=1)
    val = h @ params["val_w"].T + params["val_b"]
    return pol, val


if __name__ == "__main__":
    key = jax.random.PRNGKey(0)
    kx, kp = jax.random.split(key)

    B, C, A = 2, 4, 6                                           # batch, in_channels, num_actions
    x = jax.random.uniform(kx, (B, C, 10, 10), jnp.float32)
    params = init_params(kp, C, A)

    ref_pol, ref_val = reference_forward(x, params)

    # 1) f32 compute: tight numerical check of the fused-kernel math.
    fwd_f32 = jax.jit(functools.partial(ac_network_forward, compute_dtype=jnp.float32))
    pol32, val32 = fwd_f32(x, params)
    jax.block_until_ready((pol32, val32))
    assert pol32.shape == (B, A) and val32.shape == (B, 1)
    assert jnp.allclose(pol32, ref_pol, atol=1e-4), "policy mismatch (f32)"
    assert jnp.allclose(val32, ref_val, atol=1e-4), "value mismatch (f32)"
    assert jnp.allclose(jnp.sum(pol32, axis=1), 1.0, atol=1e-5)

    # 2) bf16 matmul operands (production path on v6e/v7x): loose tolerance.
    fwd_bf16 = jax.jit(functools.partial(ac_network_forward, compute_dtype=jnp.bfloat16))
    pol16, val16 = fwd_bf16(x, params)
    jax.block_until_ready((pol16, val16))
    assert pol16.shape == (B, A) and val16.shape == (B, 1)
    assert jnp.allclose(pol16, ref_pol, atol=5e-2), "policy mismatch (bf16)"
    assert jnp.allclose(val16, ref_val, atol=5e-2), "value mismatch (bf16)"
    assert jnp.allclose(jnp.sum(pol16, axis=1), 1.0, atol=1e-3)

    print("KERNEL_OK")
</pallas_src>

<mosaic_0001>
module attributes {stable_mosaic.version = 11 : i64} {
  func.func @acnet_fused_kernel(%arg0: i32, %arg1: memref<8x400xf32, #tpu.memory_space<vmem>>, %arg2: memref<400x1024xf32, #tpu.memory_space<vmem>>, %arg3: memref<1x1024xf32, #tpu.memory_space<vmem>>, %arg4: memref<1024x128xf32, #tpu.memory_space<vmem>>, %arg5: memref<1x128xf32, #tpu.memory_space<vmem>>, %arg6: memref<128x128xf32, #tpu.memory_space<vmem>>, %arg7: memref<1x128xf32, #tpu.memory_space<vmem>>, %arg8: memref<8x128xf32, #tpu.memory_space<vmem>>) attributes {dimension_semantics = [#tpu.dimension_semantics<parallel>], iteration_bounds = array<i64: 1>, scalar_prefetch = 0 : i64, scratch_operands = 0 : i64, tpu.core_type = #tpu.core_type<tc>, window_params = [{transform_indices = @transform_0, window_bounds = array<i64: 8, 400>}, {pipeline_mode = #tpu.pipeline_mode<synchronous>, transform_indices = @transform_1, window_bounds = array<i64: 400, 1024>}, {pipeline_mode = #tpu.pipeline_mode<synchronous>, transform_indices = @transform_2, window_bounds = array<i64: 1, 1024>}, {pipeline_mode = #tpu.pipeline_mode<synchronous>, transform_indices = @transform_3, window_bounds = array<i64: 1024, 128>}, {pipeline_mode = #tpu.pipeline_mode<synchronous>, transform_indices = @transform_4, window_bounds = array<i64: 1, 128>}, {pipeline_mode = #tpu.pipeline_mode<synchronous>, transform_indices = @transform_5, window_bounds = array<i64: 128, 128>}, {pipeline_mode = #tpu.pipeline_mode<synchronous>, transform_indices = @transform_6, window_bounds = array<i64: 1, 128>}, {transform_indices = @transform_7, window_bounds = array<i64: 8, 128>}]} {
    %c0 = arith.constant 0 : index
    %c0_0 = arith.constant 0 : index
    %0 = vector.load %arg1[%c0, %c0_0] : memref<8x400xf32, #tpu.memory_space<vmem>>, vector<8x400xf32>
    %c0_1 = arith.constant 0 : index
    %c0_2 = arith.constant 0 : index
    %1 = vector.load %arg2[%c0_1, %c0_2] : memref<400x1024xf32, #tpu.memory_space<vmem>>, vector<400x1024xf32>
    %cst = arith.constant dense<0.000000e+00> : vector<8x1024xf32>
    %2 = tpu.matmul %0, %1, %cst {dimension_numbers = #tpu.dot_dimension_numbers<[1], [0], [0], [1], [0, 0, 1, 1], [], []>} : vector<8x400xf32>, vector<400x1024xf32>, vector<8x1024xf32> -> vector<8x1024xf32>
    %c0_3 = arith.constant 0 : index
    %c0_4 = arith.constant 0 : index
    %3 = vector.load %arg3[%c0_3, %c0_4] : memref<1x1024xf32, #tpu.memory_space<vmem>>, vector<1x1024xf32>
    %4 = vector.broadcast %3 : vector<1x1024xf32> to vector<8x1024xf32>
    %5 = arith.addf %2, %4 : vector<8x1024xf32>
    %6 = arith.negf %5 : vector<8x1024xf32>
    %7 = math.exp %6 : vector<8x1024xf32>
    %cst_5 = arith.constant 1.000000e+00 : f32
    %8 = vector.broadcast %cst_5 : f32 to vector<8x1024xf32>
    %9 = arith.addf %8, %7 : vector<8x1024xf32>
    %10 = arith.divf %8, %9 : vector<8x1024xf32>
    %11 = arith.mulf %5, %10 : vector<8x1024xf32>
    %c0_6 = arith.constant 0 : index
    %c0_7 = arith.constant 0 : index
    %12 = vector.load %arg4[%c0_6, %c0_7] : memref<1024x128xf32, #tpu.memory_space<vmem>>, vector<1024x128xf32>
    %cst_8 = arith.constant dense<0.000000e+00> : vector<8x128xf32>
    %13 = tpu.matmul %11, %12, %cst_8 {dimension_numbers = #tpu.dot_dimension_numbers<[1], [0], [0], [1], [0, 0, 1, 1], [], []>} : vector<8x1024xf32>, vector<1024x128xf32>, vector<8x128xf32> -> vector<8x128xf32>
    %c0_9 = arith.constant 0 : index
    %c0_10 = arith.constant 0 : index
    %14 = vector.load %arg5[%c0_9, %c0_10] : memref<1x128xf32, #tpu.memory_space<vmem>>, vector<1x128xf32>
    %15 = vector.broadcast %14 : vector<1x128xf32> to vector<8x128xf32>
    %16 = arith.addf %13, %15 : vector<8x128xf32>
    %17 = arith.negf %16 : vector<8x128xf32>
    %18 = math.exp %17 : vector<8x128xf32>
    %cst_11 = arith.constant 1.000000e+00 : f32
    %19 = vector.broadcast %cst_11 : f32 to vector<8x128xf32>
    %20 = arith.addf %19, %18 : vector<8x128xf32>
    %21 = arith.divf %19, %20 : vector<8x128xf32>
    %cst_12 = arith.constant 1.000000e+00 : f32
    %22 = vector.broadcast %cst_12 : f32 to vector<8x128xf32>
    %23 = arith.subf %22, %21 : vector<8x128xf32>
    %24 = arith.mulf %16, %23 : vector<8x128xf32>
    %cst_13 = arith.constant 1.000000e+00 : f32
    %25 = vector.broadcast %cst_13 : f32 to vector<8x128xf32>
    %26 = arith.addf %25, %24 : vector<8x128xf32>
    %27 = arith.mulf %21, %26 : vector<8x128xf32>
    %c0_14 = arith.constant 0 : index
    %c0_15 = arith.constant 0 : index
    %28 = vector.load %arg6[%c0_14, %c0_15] : memref<128x128xf32, #tpu.memory_space<vmem>>, vector<128x128xf32>
    %cst_16 = arith.constant dense<0.000000e+00> : vector<8x128xf32>
    %29 = tpu.matmul %27, %28, %cst_16 {dimension_numbers = #tpu.dot_dimension_numbers<[1], [0], [0], [1], [0, 0, 1, 1], [], []>} : vector<8x128xf32>, vector<128x128xf32>, vector<8x128xf32> -> vector<8x128xf32>
    %c0_17 = arith.constant 0 : index
    %c0_18 = arith.constant 0 : index
    %30 = vector.load %arg7[%c0_17, %c0_18] : memref<1x128xf32, #tpu.memory_space<vmem>>, vector<1x128xf32>
    %31 = vector.broadcast %30 : vector<1x128xf32> to vector<8x128xf32>
    %32 = arith.addf %29, %31 : vector<8x128xf32>
    %33 = tpu.iota {dimensions = array<i32: 1>} : vector<8x128xi32>
    %c6_i32 = arith.constant 6 : i32
    %34 = vector.broadcast %c6_i32 : i32 to vector<8x128xi32>
    %35 = arith.cmpi slt, %33, %34 : vector<8x128xi32>
    %cst_19 = arith.constant 0xFF800000 : f32
    %36 = vector.broadcast %cst_19 : f32 to vector<8x128xf32>
    %37 = arith.select %35, %32, %36 : vector<8x128xi1>, vector<8x128xf32>
    %cst_20 = arith.constant dense<0xFF800000> : vector<8xf32>
    %38 = vector.multi_reduction <maximumf>, %37, %cst_20 [1] : vector<8x128xf32> to vector<8xf32>
    %39 = vector.shape_cast %38 : vector<8xf32> to vector<8x1xf32>
    %40 = vector.broadcast %39 : vector<8x1xf32> to vector<8x128xf32>
    %41 = arith.subf %37, %40 : vector<8x128xf32>
    %42 = math.exp %41 : vector<8x128xf32>
    %cst_21 = arith.constant dense<0.000000e+00> : vector<8xf32>
    %43 = vector.multi_reduction <add>, %42, %cst_21 [1] : vector<8x128xf32> to vector<8xf32>
    %44 = vector.shape_cast %43 : vector<8xf32> to vector<8x1xf32>
    %45 = vector.broadcast %44 : vector<8x1xf32> to vector<8x128xf32>
    %46 = arith.divf %42, %45 : vector<8x128xf32>
    %c6_i32_22 = arith.constant 6 : i32
    %47 = vector.broadcast %c6_i32_22 : i32 to vector<8x128xi32>
    %48 = arith.cmpi eq, %33, %47 : vector<8x128xi32>
    %49 = arith.select %48, %32, %46 : vector<8x128xi1>, vector<8x128xf32>
    %c0_23 = arith.constant 0 : index
    %c0_24 = arith.constant 0 : index
    %50 = vector.load %arg8[%c0_23, %c0_24] : memref<8x128xf32, #tpu.memory_space<vmem>>, vector<8x128xf32>
    tpu.vector_store %arg8[%c0_23, %c0_24], %49 {strides = array<i32>} : memref<8x128xf32, #tpu.memory_space<vmem>>, vector<8x128xf32>,
    return
  }
  func.func @transform_0(%arg0: i32) -> (i32, i32) {
    %c0_i32 = arith.constant 0 : i32
    %c0_i32_0 = arith.constant 0 : i32
    return %arg0, %c0_i32 : i32, i32
  }
  func.func @transform_1(%arg0: i32) -> (i32, i32) {
    %c0_i32 = arith.constant 0 : i32
    %c0_i32_0 = arith.constant 0 : i32
    %c0_i32_1 = arith.constant 0 : i32
    return %c0_i32, %c0_i32_0 : i32, i32
  }
  func.func @transform_2(%arg0: i32) -> (i32, i32) {
    %c0_i32 = arith.constant 0 : i32
    %c0_i32_0 = arith.constant 0 : i32
    %c0_i32_1 = arith.constant 0 : i32
    return %c0_i32, %c0_i32_0 : i32, i32
  }
  func.func @transform_3(%arg0: i32) -> (i32, i32) {
    %c0_i32 = arith.constant 0 : i32
    %c0_i32_0 = arith.constant 0 : i32
    %c0_i32_1 = arith.constant 0 : i32
    return %c0_i32, %c0_i32_0 : i32, i32
  }
  func.func @transform_4(%arg0: i32) -> (i32, i32) {
    %c0_i32 = arith.constant 0 : i32
    %c0_i32_0 = arith.constant 0 : i32
    %c0_i32_1 = arith.constant 0 : i32
    return %c0_i32, %c0_i32_0 : i32, i32
  }
  func.func @transform_5(%arg0: i32) -> (i32, i32) {
    %c0_i32 = arith.constant 0 : i32
    %c0_i32_0 = arith.constant 0 : i32
    %c0_i32_1 = arith.constant 0 : i32
    return %c0_i32, %c0_i32_0 : i32, i32
  }
  func.func @transform_6(%arg0: i32) -> (i32, i32) {
    %c0_i32 = arith.constant 0 : i32
    %c0_i32_0 = arith.constant 0 : i32
    %c0_i32_1 = arith.constant 0 : i32
    return %c0_i32, %c0_i32_0 : i32, i32
  }
  func.func @transform_7(%arg0: i32) -> (i32, i32) {
    %c0_i32 = arith.constant 0 : i32
    %c0_i32_0 = arith.constant 0 : i32
    return %arg0, %c0_i32 : i32, i32
  }
}

</mosaic_0001>

<llo_original>
// kernel: tile.8
$region0: #{tile.8}
  #allocation0 [shape = 's32[1]{0}', space=sflag, size = 0x4, scoped, tag = 'scoped memory for tile.8']
  %s0 = inlined_call_operand.vmem [shape: f32[16], index: 0, kind: input, shape index: {}]
  %s1 = inlined_call_operand.vmem [shape: f32[64,16], index: 1, kind: output, shape index: {}]
  // Predicated region
  $region2: #{tile.8} parent=0 // pred_check
    _
  $region3: #{tile.8} parent=0 // pred_check_branch
    %3 = sbr.rel (0) target = $region5
  $region4: #{tile.8} parent=0 // pred_region
    _
  $region5: #{tile.8} parent=0 // pred_fallthru
    _
  %v4 = vld [vmem:[%s0] ss:$0 sm:$0xff]
  %5 = vst [vmem:[%s1] sm:$0xff] %v4
  %s6 = scalar_lea.vmem %s1, 8
  %7 = vst [vmem:[%s6] sm:$0xff] %v4
  %s8 = scalar_lea.vmem %s1, 16
  %9 = vst [vmem:[%s8] sm:$0xff] %v4
  %s10 = scalar_lea.vmem %s1, 24
  %11 = vst [vmem:[%s10] sm:$0xff] %v4
  %s12 = scalar_lea.vmem %s1, 32
  %13 = vst [vmem:[%s12] sm:$0xff] %v4
  %s14 = scalar_lea.vmem %s1, 40
  %15 = vst [vmem:[%s14] sm:$0xff] %v4
  %s16 = scalar_lea.vmem %s1, 48
  %17 = vst [vmem:[%s16] sm:$0xff] %v4
  %s18 = scalar_lea.vmem %s1, 56
  %19 = vst [vmem:[%s18] sm:$0xff] %v4

// kernel: tile.9
$region0: #{tile.9}
  %s0 = inlined_call_operand.vmem [shape: f32[64,16], index: 0, kind: input, shape index: {}]
  %s1 = inlined_call_operand.vmem [shape: f32[1,1024], index: 1, kind: output, shape index: {}]
  $region1: #{tile.9} parent=0
    #allocation0 [shape = 'u8[32768]{0}', space=vmem, size = 0x8000, scoped, tag = 'scoped mem for output reshape']
    %v2 = vld [vmem:[%s0] ss:$8 sm:$0xf]
    %v3 = vld [vmem:[%s0] ss:$8 sm:$0xf0]
    %vm4 = vcmask 1047556
    %v5 = vsel %vm4, %v3, %v2
    %vm6 = vcmask 130048
    %7 = vst.msk [vmem:[#allocation0] ss:$8 sm:$0xf] %vm6, %v5
    %8 = vst.msk [vmem:[#allocation0] ss:$8 sm:$0xf0] %vm6, %v5
    %s9 = scalar_lea.vmem %s0, 7
    %v10 = vld [vmem:[%s9] ss:$8 sm:$0xf]
    %s11 = scalar_lea.vmem %s0, 7
    %v12 = vld [vmem:[%s11] ss:$8 sm:$0xf0]
    %vm13 = vcmask 1047556
    %v14 = vsel %vm13, %v12, %v10
    %15 = vrot.lane.b32.xlu0 %v14, 112
    %v16 = vpop.permute.xlu0 %15
    %vm17 = vcmask 1048448
    %18 = vst.msk [vmem:[#allocation0] ss:$8 sm:$0xf] %vm17, %v16
    %19 = vst.msk [vmem:[#allocation0] ss:$8 sm:$0xf0] %vm17, %v16
    %s20 = scalar_lea.vmem %s0, 6
    %v21 = vld [vmem:[%s20] ss:$8 sm:$0xf]
    %s22 = scalar_lea.vmem %s0, 6
    %v23 = vld [vmem:[%s22] ss:$8 sm:$0xf0]
    %vm24 = vcmask 1047556
    %v25 = vsel %vm24, %v23, %v21
    %26 = vrot.lane.b32.xlu0 %v25, 96
    %v27 = vpop.permute.xlu0 %26
    %vm28 = vcmask 917248
    %29 = vst.msk [vmem:[#allocation0] ss:$8 sm:$0xf] %vm28, %v27
    %30 = vst.msk [vmem:[#allocation0] ss:$8 sm:$0xf0] %vm28, %v27
    %s31 = scalar_lea.vmem %s0, 5
    %v32 = vld [vmem:[%s31] ss:$8 sm:$0xf]
    %s33 = scalar_lea.vmem %s0, 5
    %v34 = vld [vmem:[%s33] ss:$8 sm:$0xf0]
    %vm35 = vcmask 1047556
    %v36 = vsel %vm35, %v34, %v32
    %37 = vrot.lane.b32.xlu0 %v36, 80
    %v38 = vpop.permute.xlu0 %37
    %vm39 = vcmask 786048
    %40 = vst.msk [vmem:[#allocation0] ss:$8 sm:$0xf] %vm39, %v38
    %41 = vst.msk [vmem:[#allocation0] ss:$8 sm:$0xf0] %vm39, %v38
    %s42 = scalar_lea.vmem %s0, 4
    %v43 = vld [vmem:[%s42] ss:$8 sm:$0xf]
    %s44 = scalar_lea.vmem %s0, 4
    %v45 = vld [vmem:[%s44] ss:$8 sm:$0xf0]
    %vm46 = vcmask 1047556
    %v47 = vsel %vm46, %v45, %v43
    %48 = vrot.lane.b32.xlu0 %v47, 64
    %v49 = vpop.permute.xlu0 %48
    %vm50 = vcmask 654848
    %51 = vst.msk [vmem:[#allocation0] ss:$8 sm:$0xf] %vm50, %v49
    %52 = vst.msk [vmem:[#allocation0] ss:$8 sm:$0xf0] %vm50, %v49
    %s53 = scalar_lea.vmem %s0, 3
    %v54 = vld [vmem:[%s53] ss:$8 sm:$0xf]
    %s55 = scalar_lea.vmem %s0, 3
    %v56 = vld [vmem:[%s55] ss:$8 sm:$0xf0]
    %vm57 = vcmask 1047556
    %v58 = vsel %vm57, %v56, %v54
    %59 = vrot.lane.b32.xlu0 %v58, 48
    %v60 = vpop.permute.xlu0 %59
    %vm61 = vcmask 523648
    %62 = vst.msk [vmem:[#allocation0] ss:$8 sm:$0xf] %vm61, %v60
    %63 = vst.msk [vmem:[#allocation0] ss:$8 sm:$0xf0] %vm61, %v60
    %s64 = scalar_lea.vmem %s0, 2
    %v65 = vld [vmem:[%s64] ss:$8 sm:$0xf]
    %s66 = scalar_lea.vmem %s0, 2
    %v67 = vld [vmem:[%s66] ss:$8 sm:$0xf0]
    %vm68 = vcmask 1047556
    %v69 = vsel %vm68, %v67, %v65
    %70 = vrot.lane.b32.xlu0 %v69, 32
    %v71 = vpop.permute.xlu0 %70
    %vm72 = vcmask 392448
    %73 = vst.msk [vmem:[#allocation0] ss:$8 sm:$0xf] %vm72, %v71
    %74 = vst.msk [vmem:[#allocation0] ss:$8 sm:$0xf0] %vm72, %v71
    %s75 = scalar_lea.vmem %s0, 1
    %v76 = vld [vmem:[%s75] ss:$8 sm:$0xf]
    %s77 = scalar_lea.vmem %s0, 1
    %v78 = vld [vmem:[%s77] ss:$8 sm:$0xf0]
    %vm79 = vcmask 1047556
    %v80 = vsel %vm79, %v78, %v76
    %81 = vrot.lane.b32.xlu0 %v80, 16
    %v82 = vpop.permute.xlu0 %81
    %vm83 = vcmask 261248
    %84 = vst.msk [vmem:[#allocation0] ss:$8 sm:$0xf] %vm83, %v82
    %85 = vst.msk [vmem:[#allocation0] ss:$8 sm:$0xf0] %vm83, %v82
    %s87 = sshll.u32 1, 1
    %s88 = ssub.s32 %s87, 1
    %v90 = vld [vmem:[#allocation0] sm:%s88]
    %s91 = sshll.u32 1, 1
    %s92 = ssub.s32 %s91, 1
    %93 = vst [vmem:[%s1] sm:%s92] %v90
    %s94 = scalar_lea.vmem [#allocation0], 8
    %v95 = vld [vmem:[%s94] sm:%s88]
    %s96 = sshll.u32 1, 1
    %s97 = ssub.s32 %s96, 1
    %s98 = scalar_lea.vmem %s1, 1
    %99 = vst [vmem:[%s98] sm:%s97] %v95
    %s100 = scalar_lea.vmem [#allocation0], 16
    %v101 = vld [vmem:[%s100] sm:%s88]
    %s102 = sshll.u32 1, 1
    %s103 = ssub.s32 %s102, 1
    %s104 = smul.addr 1, 2
    %s105 = scalar_lea.vmem %s1, %s104
    %106 = vst [vmem:[%s105] sm:%s103] %v101
    %s107 = scalar_lea.vmem [#allocation0], 24
    %v108 = vld [vmem:[%s107] sm:%s88]
    %s109 = sshll.u32 1, 1
    %s110 = ssub.s32 %s109, 1
    %s111 = smul.addr 1, 3
    %s112 = scalar_lea.vmem %s1, %s111
    %113 = vst [vmem:[%s112] sm:%s110] %v108
    %s114 = scalar_lea.vmem [#allocation0], 32
    %v115 = vld [vmem:[%s114] sm:%s88]
    %s116 = sshll.u32 1, 1
    %s117 = ssub.s32 %s116, 1
    %s118 = smul.addr 1, 4
    %s119 = scalar_lea.vmem %s1, %s118
    %120 = vst [vmem:[%s119] sm:%s117] %v115
    %s121 = scalar_lea.vmem [#allocation0], 40
    %v122 = vld [vmem:[%s121] sm:%s88]
    %s123 = sshll.u32 1, 1
    %s124 = ssub.s32 %s123, 1
    %s125 = smul.addr 1, 5
    %s126 = scalar_lea.vmem %s1, %s125
    %127 = vst [vmem:[%s126] sm:%s124] %v122
    %s128 = scalar_lea.vmem [#allocation0], 48
    %v129 = vld [vmem:[%s128] sm:%s88]
    %s130 = sshll.u32 1, 1
    %s131 = ssub.s32 %s130, 1
    %s132 = smul.addr 1, 6
    %s133 = scalar_lea.vmem %s1, %s132
    %134 = vst [vmem:[%s133] sm:%s131] %v129
    %s135 = scalar_lea.vmem [#allocation0], 56
    %v136 = vld [vmem:[%s135] sm:%s88]
    %s137 = sshll.u32 1, 1
    %s138 = ssub.s32 %s137, 1
    %s139 = smul.addr 1, 7
    %s140 = scalar_lea.vmem %s1, %s139
    %141 = vst [vmem:[%s140] sm:%s138] %v136

// kernel: ac_network_forward.1
$region0: #{ac_network_forward.1}
  #allocation0 [shape = 'u32[]', space=smem, size = 0x4, offset = 0x4, fixed_abs, tag = 'smem constant byte address 0x4 - core index']
  #allocation1 [shape = 'u32[144,128]{1,0:T(1,128)}', space=vmem, size = 0x12000, scoped, tag = 'internal scratch']
  %s0 = inlined_call_operand.vmem [shape: f32[8,400], index: 0, kind: input, shape index: {}]
  %s1 = inlined_call_operand.vmem [shape: f32[400,1024], index: 1, kind: input, shape index: {}]
  %s2 = inlined_call_operand.vmem [shape: f32[1,1024], index: 2, kind: input, shape index: {}]
  %s3 = inlined_call_operand.vmem [shape: f32[1024,128], index: 3, kind: input, shape index: {}]
  %s4 = inlined_call_operand.vmem [shape: f32[1,128], index: 4, kind: input, shape index: {}]
  %s5 = inlined_call_operand.vmem [shape: f32[128,128], index: 5, kind: input, shape index: {}]
  %s6 = inlined_call_operand.vmem [shape: f32[1,128], index: 6, kind: input, shape index: {}]
  %s7 = inlined_call_operand.vmem [shape: f32[8,128], index: 7, kind: output, shape index: {}]
  %s8 = sld [smem:[#allocation0]]
  $region38: #{ac_network_forward.1} parent=0
    _
  %s10 = ssub.s32 1, %s8
  %s11 = scalar_select 0, %s10, %s8
  // Predicated region
  $region2: #{ac_network_forward.1} parent=0 // pred_check
    _
  $region3: #{ac_network_forward.1} parent=0 // pred_check_branch
    %13 = sbr.rel (0) target = $region5
  $region4: #{ac_network_forward.1} parent=0 // pred_region
    _
  $region5: #{ac_network_forward.1} parent=0 // pred_fallthru
    _
  // Predicated region
  $region6: #{ac_network_forward.1} parent=0 // pred_check
    _
  $region7: #{ac_network_forward.1} parent=0 // pred_check_branch
    %15 = sbr.rel (0) target = $region9
  $region8: #{ac_network_forward.1} parent=0 // pred_region
    _
  $region9: #{ac_network_forward.1} parent=0 // pred_fallthru
    _
  // Predicated region
  $region10: #{ac_network_forward.1} parent=0 // pred_check
    _
  $region11: #{ac_network_forward.1} parent=0 // pred_check_branch
    %17 = sbr.rel (0) target = $region13
  $region12: #{ac_network_forward.1} parent=0 // pred_region
    _
  $region13: #{ac_network_forward.1} parent=0 // pred_fallthru
    _
  // Predicated region
  $region14: #{ac_network_forward.1} parent=0 // pred_check
    _
  $region15: #{ac_network_forward.1} parent=0 // pred_check_branch
    %19 = sbr.rel (0) target = $region17
  $region16: #{ac_network_forward.1} parent=0 // pred_region
    _
  $region17: #{ac_network_forward.1} parent=0 // pred_fallthru
    _
  // Predicated region
  $region18: #{ac_network_forward.1} parent=0 // pred_check
    _
  $region19: #{ac_network_forward.1} parent=0 // pred_check_branch
    %21 = sbr.rel (0) target = $region21
  $region20: #{ac_network_forward.1} parent=0 // pred_region
    _
  $region21: #{ac_network_forward.1} parent=0 // pred_fallthru
    _
  // Predicated region
  $region22: #{ac_network_forward.1} parent=0 // pred_check
    _
  $region23: #{ac_network_forward.1} parent=0 // pred_check_branch
    %23 = sbr.rel (0) target = $region25
  $region24: #{ac_network_forward.1} parent=0 // pred_region
    _
  $region25: #{ac_network_forward.1} parent=0 // pred_fallthru
    _
  // Predicated region
  $region26: #{ac_network_forward.1} parent=0 // pred_check
    _
  $region27: #{ac_network_forward.1} parent=0 // pred_check_branch
    %25 = sbr.rel (0) target = $region29
  $region28: #{ac_network_forward.1} parent=0 // pred_region
    _
  $region29: #{ac_network_forward.1} parent=0 // pred_fallthru
    _
  %v26 = vld [vmem:[%s0] sm:$0xff]
  %v27 = vld [vmem:[%s0 + $0x8] sm:$0xff]
  %v28 = vld [vmem:[%s0 + $0x10] sm:$0xff]
  %v29 = vld [vmem:[%s0 + $0x18] sm:$0xff]
  %v30 = vld [vmem:[%s1] sm:$0xff]
  %v31 = vld [vmem:[%s1 + $0x8] sm:$0xff]
  %v32 = vld [vmem:[%s1 + $0x10] sm:$0xff]
  %v33 = vld [vmem:[%s1 + $0x18] sm:$0xff]
  %v34 = vld [vmem:[%s1 + $0x20] sm:$0xff]
  %v35 = vld [vmem:[%s1 + $0x28] sm:$0xff]
  %v36 = vld [vmem:[%s1 + $0x30] sm:$0xff]
  %v37 = vld [vmem:[%s1 + $0x38] sm:$0xff]
  %v38 = vld [vmem:[%s1 + $0x40] sm:$0xff]
  %v39 = vld [vmem:[%s1 + $0x48] sm:$0xff]
  %v40 = vld [vmem:[%s1 + $0x50] sm:$0xff]
  %v41 = vld [vmem:[%s1 + $0x58] sm:$0xff]
  %v42 = vld [vmem:[%s1 + $0x60] sm:$0xff]
  %v43 = vld [vmem:[%s1 + $0x68] sm:$0xff]
  %v44 = vld [vmem:[%s1 + $0x70] sm:$0xff]
  %v45 = vld [vmem:[%s1 + $0x78] sm:$0xff]
  %v46 = vld [vmem:[%s1 + $0x80] sm:$0xff]
  %v47 = vld [vmem:[%s1 + $0x88] sm:$0xff]
  %v48 = vld [vmem:[%s1 + $0x90] sm:$0xff]
  %v49 = vld [vmem:[%s1 + $0x98] sm:$0xff]
  %v50 = vld [vmem:[%s1 + $0xa0] sm:$0xff]
  %v51 = vld [vmem:[%s1 + $0xa8] sm:$0xff]
  %v52 = vld [vmem:[%s1 + $0xb0] sm:$0xff]
  %v53 = vld [vmem:[%s1 + $0xb8] sm:$0xff]
  %v54 = vld [vmem:[%s1 + $0xc0] sm:$0xff]
  %v55 = vld [vmem:[%s1 + $0xc8] sm:$0xff]
  %v56 = vld [vmem:[%s1 + $0xd0] sm:$0xff]
  %v57 = vld [vmem:[%s1 + $0xd8] sm:$0xff]
  %v58 = vld [vmem:[%s1 + $0xe0] sm:$0xff]
  %v59 = vld [vmem:[%s1 + $0xe8] sm:$0xff]
  %v60 = vld [vmem:[%s1 + $0xf0] sm:$0xff]
  %v61 = vld [vmem:[%s1 + $0xf8] sm:$0xff]
  %v62 = vld [vmem:[%s1 + $0x100] sm:$0xff]
  %v63 = vld [vmem:[%s1 + $0x108] sm:$0xff]
  %v64 = vld [vmem:[%s1 + $0x110] sm:$0xff]
  %v65 = vld [vmem:[%s1 + $0x118] sm:$0xff]
  %v66 = vld [vmem:[%s1 + $0x120] sm:$0xff]
  %v67 = vld [vmem:[%s1 + $0x128] sm:$0xff]
  %v68 = vld [vmem:[%s1 + $0x130] sm:$0xff]
  %v69 = vld [vmem:[%s1 + $0x138] sm:$0xff]
  %v70 = vld [vmem:[%s1 + $0x140] sm:$0xff]
  %v71 = vld [vmem:[%s1 + $0x148] sm:$0xff]
  %v72 = vld [vmem:[%s1 + $0x150] sm:$0xff]
  %v73 = vld [vmem:[%s1 + $0x158] sm:$0xff]
  %v74 = vld [vmem:[%s1 + $0x160] sm:$0xff]
  %v75 = vld [vmem:[%s1 + $0x168] sm:$0xff]
  %v76 = vld [vmem:[%s1 + $0x170] sm:$0xff]
  %v77 = vld [vmem:[%s1 + $0x178] sm:$0xff]
  %v78 = vld [vmem:[%s1 + $0x180] sm:$0xff]
  %v79 = vld [vmem:[%s1 + $0x188] sm:$0xff]
  %v80 = vld [vmem:[%s1 + $0x190] sm:$0xff]
  %v81 = vld [vmem:[%s1 + $0x198] sm:$0xff]
  %v82 = vld [vmem:[%s1 + $0x1a0] sm:$0xff]
  %v83 = vld [vmem:[%s1 + $0x1a8] sm:$0xff]
  %v84 = vld [vmem:[%s1 + $0x1b0] sm:$0xff]
  %v85 = vld [vmem:[%s1 + $0x1b8] sm:$0xff]
  %v86 = vld [vmem:[%s1 + $0x1c0] sm:$0xff]
  %v87 = vld [vmem:[%s1 + $0x1c8] sm:$0xff]
  %v88 = vld [vmem:[%s1 + $0x1d0] sm:$0xff]
  %v89 = vld [vmem:[%s1 + $0x1d8] sm:$0xff]
  %v90 = vld [vmem:[%s1 + $0x1e0] sm:$0xff]
  %v91 = vld [vmem:[%s1 + $0x1e8] sm:$0xff]
  %v92 = vld [vmem:[%s1 + $0x1f0] sm:$0xff]
  %v93 = vld [vmem:[%s1 + $0x1f8] sm:$0xff]
  %v94 = vld [vmem:[%s1 + $0x200] sm:$0xff]
  %v95 = vld [vmem:[%s1 + $0x208] sm:$0xff]
  %v96 = vld [vmem:[%s1 + $0x210] sm:$0xff]
  %v97 = vld [vmem:[%s1 + $0x218] sm:$0xff]
  %v98 = vld [vmem:[%s1 + $0x220] sm:$0xff]
  %v99 = vld [vmem:[%s1 + $0x228] sm:$0xff]
  %v100 = vld [vmem:[%s1 + $0x230] sm:$0xff]
  %v101 = vld [vmem:[%s1 + $0x238] sm:$0xff]
  %v102 = vld [vmem:[%s1 + $0x240] sm:$0xff]
  %v103 = vld [vmem:[%s1 + $0x248] sm:$0xff]
  %v104 = vld [vmem:[%s1 + $0x250] sm:$0xff]
  %v105 = vld [vmem:[%s1 + $0x258] sm:$0xff]
  %v106 = vld [vmem:[%s1 + $0x260] sm:$0xff]
  %v107 = vld [vmem:[%s1 + $0x268] sm:$0xff]
  %v108 = vld [vmem:[%s1 + $0x270] sm:$0xff]
  %v109 = vld [vmem:[%s1 + $0x278] sm:$0xff]
  %v110 = vld [vmem:[%s1 + $0x280] sm:$0xff]
  %v111 = vld [vmem:[%s1 + $0x288] sm:$0xff]
  %v112 = vld [vmem:[%s1 + $0x290] sm:$0xff]
  %v113 = vld [vmem:[%s1 + $0x298] sm:$0xff]
  %v114 = vld [vmem:[%s1 + $0x2a0] sm:$0xff]
  %v115 = vld [vmem:[%s1 + $0x2a8] sm:$0xff]
  %v116 = vld [vmem:[%s1 + $0x2b0] sm:$0xff]
  %v117 = vld [vmem:[%s1 + $0x2b8] sm:$0xff]
  %v118 = vld [vmem:[%s1 + $0x2c0] sm:$0xff]
  %v119 = vld [vmem:[%s1 + $0x2c8] sm:$0xff]
  %v120 = vld [vmem:[%s1 + $0x2d0] sm:$0xff]
  %v121 = vld [vmem:[%s1 + $0x2d8] sm:$0xff]
  %v122 = vld [vmem:[%s1 + $0x2e0] sm:$0xff]
  %v123 = vld [vmem:[%s1 + $0x2e8] sm:$0xff]
  %v124 = vld [vmem:[%s1 + $0x2f0] sm:$0xff]
  %v125 = vld [vmem:[%s1 + $0x2f8] sm:$0xff]
  %v126 = vld [vmem:[%s1 + $0x300] sm:$0xff]
  %v127 = vld [vmem:[%s1 + $0x308] sm:$0xff]
  %v128 = vld [vmem:[%s1 + $0x310] sm:$0xff]
  %v129 = vld [vmem:[%s1 + $0x318] sm:$0xff]
  %v130 = vld [vmem:[%s1 + $0x320] sm:$0xff]
  %v131 = vld [vmem:[%s1 + $0x328] sm:$0xff]
  %v132 = vld [vmem:[%s1 + $0x330] sm:$0xff]
  %v133 = vld [vmem:[%s1 + $0x338] sm:$0xff]
  %v134 = vld [vmem:[%s1 + $0x340] sm:$0xff]
  %v135 = vld [vmem:[%s1 + $0x348] sm:$0xff]
  %v136 = vld [vmem:[%s1 + $0x350] sm:$0xff]
  %v137 = vld [vmem:[%s1 + $0x358] sm:$0xff]
  %v138 = vld [vmem:[%s1 + $0x360] sm:$0xff]
  %v139 = vld [vmem:[%s1 + $0x368] sm:$0xff]
  %v140 = vld [vmem:[%s1 + $0x370] sm:$0xff]
  %v141 = vld [vmem:[%s1 + $0x378] sm:$0xff]
  %v142 = vld [vmem:[%s1 + $0x380] sm:$0xff]
  %v143 = vld [vmem:[%s1 + $0x388] sm:$0xff]
  %v144 = vld [vmem:[%s1 + $0x390] sm:$0xff]
  %v145 = vld [vmem:[%s1 + $0x398] sm:$0xff]
  %v146 = vld [vmem:[%s1 + $0x3a0] sm:$0xff]
  %v147 = vld [vmem:[%s1 + $0x3a8] sm:$0xff]
  %v148 = vld [vmem:[%s1 + $0x3b0] sm:$0xff]
  %v149 = vld [vmem:[%s1 + $0x3b8] sm:$0xff]
  %v150 = vld [vmem:[%s1 + $0x3c0] sm:$0xff]
  %v151 = vld [vmem:[%s1 + $0x3c8] sm:$0xff]
  %v152 = vld [vmem:[%s1 + $0x3d0] sm:$0xff]
  %v153 = vld [vmem:[%s1 + $0x3d8] sm:$0xff]
  %v154 = vld [vmem:[%s1 + $0x3e0] sm:$0xff]
  %v155 = vld [vmem:[%s1 + $0x3e8] sm:$0xff]
  %v156 = vld [vmem:[%s1 + $0x3f0] sm:$0xff]
  %v157 = vld [vmem:[%s1 + $0x3f8] sm:$0xff]
  %v158 = vld [vmem:[%s1 + $0x400] sm:$0xff]
  %v159 = vld [vmem:[%s1 + $0x408] sm:$0xff]
  %v160 = vld [vmem:[%s1 + $0x410] sm:$0xff]
  %v161 = vld [vmem:[%s1 + $0x418] sm:$0xff]
  %v162 = vld [vmem:[%s1 + $0x420] sm:$0xff]
  %v163 = vld [vmem:[%s1 + $0x428] sm:$0xff]
  %v164 = vld [vmem:[%s1 + $0x430] sm:$0xff]
  %v165 = vld [vmem:[%s1 + $0x438] sm:$0xff]
  %v166 = vld [vmem:[%s1 + $0x440] sm:$0xff]
  %v167 = vld [vmem:[%s1 + $0x448] sm:$0xff]
  %v168 = vld [vmem:[%s1 + $0x450] sm:$0xff]
  %v169 = vld [vmem:[%s1 + $0x458] sm:$0xff]
  %v170 = vld [vmem:[%s1 + $0x460] sm:$0xff]
  %v171 = vld [vmem:[%s1 + $0x468] sm:$0xff]
  %v172 = vld [vmem:[%s1 + $0x470] sm:$0xff]
  %v173 = vld [vmem:[%s1 + $0x478] sm:$0xff]
  %v174 = vld [vmem:[%s1 + $0x480] sm:$0xff]
  %v175 = vld [vmem:[%s1 + $0x488] sm:$0xff]
  %v176 = vld [vmem:[%s1 + $0x490] sm:$0xff]
  %v177 = vld [vmem:[%s1 + $0x498] sm:$0xff]
  %v178 = vld [vmem:[%s1 + $0x4a0] sm:$0xff]
  %v179 = vld [vmem:[%s1 + $0x4a8] sm:$0xff]
  %v180 = vld [vmem:[%s1 + $0x4b0] sm:$0xff]
  %v181 = vld [vmem:[%s1 + $0x4b8] sm:$0xff]
  %v182 = vld [vmem:[%s1 + $0x4c0] sm:$0xff]
  %v183 = vld [vmem:[%s1 + $0x4c8] sm:$0xff]
  %v184 = vld [vmem:[%s1 + $0x4d0] sm:$0xff]
  %v185 = vld [vmem:[%s1 + $0x4d8] sm:$0xff]
  %v186 = vld [vmem:[%s1 + $0x4e0] sm:$0xff]
  %v187 = vld [vmem:[%s1 + $0x4e8] sm:$0xff]
  %v188 = vld [vmem:[%s1 + $0x4f0] sm:$0xff]
  %v189 = vld [vmem:[%s1 + $0x4f8] sm:$0xff]
  %v190 = vld [vmem:[%s1 + $0x500] sm:$0xff]
  %v191 = vld [vmem:[%s1 + $0x508] sm:$0xff]
  %v192 = vld [vmem:[%s1 + $0x510] sm:$0xff]
  %v193 = vld [vmem:[%s1 + $0x518] sm:$0xff]
  %v194 = vld [vmem:[%s1 + $0x520] sm:$0xff]
  %v195 = vld [vmem:[%s1 + $0x528] sm:$0xff]
  %v196 = vld [vmem:[%s1 + $0x530] sm:$0xff]
  %v197 = vld [vmem:[%s1 + $0x538] sm:$0xff]
  %v198 = vld [vmem:[%s1 + $0x540] sm:$0xff]
  %v199 = vld [vmem:[%s1 + $0x548] sm:$0xff]
  %v200 = vld [vmem:[%s1 + $0x550] sm:$0xff]
  %v201 = vld [vmem:[%s1 + $0x558] sm:$0xff]
  %v202 = vld [vmem:[%s1 + $0x560] sm:$0xff]
  %v203 = vld [vmem:[%s1 + $0x568] sm:$0xff]
  %v204 = vld [vmem:[%s1 + $0x570] sm:$0xff]
  %v205 = vld [vmem:[%s1 + $0x578] sm:$0xff]
  %v206 = vld [vmem:[%s1 + $0x580] sm:$0xff]
  %v207 = vld [vmem:[%s1 + $0x588] sm:$0xff]
  %v208 = vld [vmem:[%s1 + $0x590] sm:$0xff]
  %v209 = vld [vmem:[%s1 + $0x598] sm:$0xff]
  %v210 = vld [vmem:[%s1 + $0x5a0] sm:$0xff]
  %v211 = vld [vmem:[%s1 + $0x5a8] sm:$0xff]
  %v212 = vld [vmem:[%s1 + $0x5b0] sm:$0xff]
  %v213 = vld [vmem:[%s1 + $0x5b8] sm:$0xff]
  %v214 = vld [vmem:[%s1 + $0x5c0] sm:$0xff]
  %v215 = vld [vmem:[%s1 + $0x5c8] sm:$0xff]
  %v216 = vld [vmem:[%s1 + $0x5d0] sm:$0xff]
  %v217 = vld [vmem:[%s1 + $0x5d8] sm:$0xff]
  %v218 = vld [vmem:[%s1 + $0x5e0] sm:$0xff]
  %v219 = vld [vmem:[%s1 + $0x5e8] sm:$0xff]
  %v220 = vld [vmem:[%s1 + $0x5f0] sm:$0xff]
  %v221 = vld [vmem:[%s1 + $0x5f8] sm:$0xff]
  %v222 = vld [vmem:[%s1 + $0x600] sm:$0xff]
  %v223 = vld [vmem:[%s1 + $0x608] sm:$0xff]
  %v224 = vld [vmem:[%s1 + $0x610] sm:$0xff]
  %v225 = vld [vmem:[%s1 + $0x618] sm:$0xff]
  %v226 = vld [vmem:[%s1 + $0x620] sm:$0xff]
  %v227 = vld [vmem:[%s1 + $0x628] sm:$0xff]
  %v228 = vld [vmem:[%s1 + $0x630] sm:$0xff]
  %v229 = vld [vmem:[%s1 + $0x638] sm:$0xff]
  %v230 = vld [vmem:[%s1 + $0x640] sm:$0xff]
  %v231 = vld [vmem:[%s1 + $0x648] sm:$0xff]
  %v232 = vld [vmem:[%s1 + $0x650] sm:$0xff]
  %v233 = vld [vmem:[%s1 + $0x658] sm:$0xff]
  %v234 = vld [vmem:[%s1 + $0x660] sm:$0xff]
  %v235 = vld [vmem:[%s1 + $0x668] sm:$0xff]
  %v236 = vld [vmem:[%s1 + $0x670] sm:$0xff]
  %v237 = vld [vmem:[%s1 + $0x678] sm:$0xff]
  %v238 = vld [vmem:[%s1 + $0x680] sm:$0xff]
  %v239 = vld [vmem:[%s1 + $0x688] sm:$0xff]
  %v240 = vld [vmem:[%s1 + $0x690] sm:$0xff]
  %v241 = vld [vmem:[%s1 + $0x698] sm:$0xff]
  %v242 = vld [vmem:[%s1 + $0x6a0] sm:$0xff]
  %v243 = vld [vmem:[%s1 + $0x6a8] sm:$0xff]
  %v244 = vld [vmem:[%s1 + $0x6b0] sm:$0xff]
  %v245 = vld [vmem:[%s1 + $0x6b8] sm:$0xff]
  %v246 = vld [vmem:[%s1 + $0x6c0] sm:$0xff]
  %v247 = vld [vmem:[%s1 + $0x6c8] sm:$0xff]
  %v248 = vld [vmem:[%s1 + $0x6d0] sm:$0xff]
  %v249 = vld [vmem:[%s1 + $0x6d8] sm:$0xff]
  %v250 = vld [vmem:[%s1 + $0x6e0] sm:$0xff]
  %v251 = vld [vmem:[%s1 + $0x6e8] sm:$0xff]
  %v252 = vld [vmem:[%s1 + $0x6f0] sm:$0xff]
  %v253 = vld [vmem:[%s1 + $0x6f8] sm:$0xff]
  %v254 = vld [vmem:[%s1 + $0x700] sm:$0xff]
  %v255 = vld [vmem:[%s1 + $0x708] sm:$0xff]
  %v256 = vld [vmem:[%s1 + $0x710] sm:$0xff]
  %v257 = vld [vmem:[%s1 + $0x718] sm:$0xff]
  %v258 = vld [vmem:[%s1 + $0x720] sm:$0xff]
  %v259 = vld [vmem:[%s1 + $0x728] sm:$0xff]
  %v260 = vld [vmem:[%s1 + $0x730] sm:$0xff]
  %v261 = vld [vmem:[%s1 + $0x738] sm:$0xff]
  %v262 = vld [vmem:[%s1 + $0x740] sm:$0xff]
  %v263 = vld [vmem:[%s1 + $0x748] sm:$0xff]
  %v264 = vld [vmem:[%s1 + $0x750] sm:$0xff]
  %v265 = vld [vmem:[%s1 + $0x758] sm:$0xff]
  %v266 = vld [vmem:[%s1 + $0x760] sm:$0xff]
  %v267 = vld [vmem:[%s1 + $0x768] sm:$0xff]
  %v268 = vld [vmem:[%s1 + $0x770] sm:$0xff]
  %v269 = vld [vmem:[%s1 + $0x778] sm:$0xff]
  %v270 = vld [vmem:[%s1 + $0x780] sm:$0xff]
  %v271 = vld [vmem:[%s1 + $0x788] sm:$0xff]
  %v272 = vld [vmem:[%s1 + $0x790] sm:$0xff]
  %v273 = vld [vmem:[%s1 + $0x798] sm:$0xff]
  %v274 = vld [vmem:[%s1 + $0x7a0] sm:$0xff]
  %v275 = vld [vmem:[%s1 + $0x7a8] sm:$0xff]
  %v276 = vld [vmem:[%s1 + $0x7b0] sm:$0xff]
  %v277 = vld [vmem:[%s1 + $0x7b8] sm:$0xff]
  %v278 = vld [vmem:[%s1 + $0x7c0] sm:$0xff]
  %v279 = vld [vmem:[%s1 + $0x7c8] sm:$0xff]
  %v280 = vld [vmem:[%s1 + $0x7d0] sm:$0xff]
  %v281 = vld [vmem:[%s1 + $0x7d8] sm:$0xff]
  %v282 = vld [vmem:[%s1 + $0x7e0] sm:$0xff]
  %v283 = vld [vmem:[%s1 + $0x7e8] sm:$0xff]
  %v284 = vld [vmem:[%s1 + $0x7f0] sm:$0xff]
  %v285 = vld [vmem:[%s1 + $0x7f8] sm:$0xff]
  %v286 = vld [vmem:[%s1 + $0x800] sm:$0xff]
  %v287 = vld [vmem:[%s1 + $0x808] sm:$0xff]
  %v288 = vld [vmem:[%s1 + $0x810] sm:$0xff]
  %v289 = vld [vmem:[%s1 + $0x818] sm:$0xff]
  %v290 = vld [vmem:[%s1 + $0x820] sm:$0xff]
  %v291 = vld [vmem:[%s1 + $0x828] sm:$0xff]
  %v292 = vld [vmem:[%s1 + $0x830] sm:$0xff]
  %v293 = vld [vmem:[%s1 + $0x838] sm:$0xff]
  %v294 = vld [vmem:[%s1 + $0x840] sm:$0xff]
  %v295 = vld [vmem:[%s1 + $0x848] sm:$0xff]
  %v296 = vld [vmem:[%s1 + $0x850] sm:$0xff]
  %v297 = vld [vmem:[%s1 + $0x858] sm:$0xff]
  %v298 = vld [vmem:[%s1 + $0x860] sm:$0xff]
  %v299 = vld [vmem:[%s1 + $0x868] sm:$0xff]
  %v300 = vld [vmem:[%s1 + $0x870] sm:$0xff]
  %v301 = vld [vmem:[%s1 + $0x878] sm:$0xff]
  %v302 = vld [vmem:[%s1 + $0x880] sm:$0xff]
  %v303 = vld [vmem:[%s1 + $0x888] sm:$0xff]
  %v304 = vld [vmem:[%s1 + $0x890] sm:$0xff]
  %v305 = vld [vmem:[%s1 + $0x898] sm:$0xff]
  %v306 = vld [vmem:[%s1 + $0x8a0] sm:$0xff]
  %v307 = vld [vmem:[%s1 + $0x8a8] sm:$0xff]
  %v308 = vld [vmem:[%s1 + $0x8b0] sm:$0xff]
  %v309 = vld [vmem:[%s1 + $0x8b8] sm:$0xff]
  %v310 = vld [vmem:[%s1 + $0x8c0] sm:$0xff]
  %v311 = vld [vmem:[%s1 + $0x8c8] sm:$0xff]
  %v312 = vld [vmem:[%s1 + $0x8d0] sm:$0xff]
  %v313 = vld [vmem:[%s1 + $0x8d8] sm:$0xff]
  %v314 = vld [vmem:[%s1 + $0x8e0] sm:$0xff]
  %v315 = vld [vmem:[%s1 + $0x8e8] sm:$0xff]
  %v316 = vld [vmem:[%s1 + $0x8f0] sm:$0xff]
  %v317 = vld [vmem:[%s1 + $0x8f8] sm:$0xff]
  %v318 = vld [vmem:[%s1 + $0x900] sm:$0xff]
  %v319 = vld [vmem:[%s1 + $0x908] sm:$0xff]
  %v320 = vld [vmem:[%s1 + $0x910] sm:$0xff]
  %v321 = vld [vmem:[%s1 + $0x918] sm:$0xff]
  %v322 = vld [vmem:[%s1 + $0x920] sm:$0xff]
  %v323 = vld [vmem:[%s1 + $0x928] sm:$0xff]
  %v324 = vld [vmem:[%s1 + $0x930] sm:$0xff]
  %v325 = vld [vmem:[%s1 + $0x938] sm:$0xff]
  %v326 = vld [vmem:[%s1 + $0x940] sm:$0xff]
  %v327 = vld [vmem:[%s1 + $0x948] sm:$0xff]
  %v328 = vld [vmem:[%s1 + $0x950] sm:$0xff]
  %v329 = vld [vmem:[%s1 + $0x958] sm:$0xff]
  %v330 = vld [vmem:[%s1 + $0x960] sm:$0xff]
  %v331 = vld [vmem:[%s1 + $0x968] sm:$0xff]
  %v332 = vld [vmem:[%s1 + $0x970] sm:$0xff]
  %v333 = vld [vmem:[%s1 + $0x978] sm:$0xff]
  %v334 = vld [vmem:[%s1 + $0x980] sm:$0xff]
  %v335 = vld [vmem:[%s1 + $0x988] sm:$0xff]
  %v336 = vld [vmem:[%s1 + $0x990] sm:$0xff]
  %v337 = vld [vmem:[%s1 + $0x998] sm:$0xff]
  %v338 = vld [vmem:[%s1 + $0x9a0] sm:$0xff]
  %v339 = vld [vmem:[%s1 + $0x9a8] sm:$0xff]
  %v340 = vld [vmem:[%s1 + $0x9b0] sm:$0xff]
  %v341 = vld [vmem:[%s1 + $0x9b8] sm:$0xff]
  %v342 = vld [vmem:[%s1 + $0x9c0] sm:$0xff]
  %v343 = vld [vmem:[%s1 + $0x9c8] sm:$0xff]
  %v344 = vld [vmem:[%s1 + $0x9d0] sm:$0xff]
  %v345 = vld [vmem:[%s1 + $0x9d8] sm:$0xff]
  %v346 = vld [vmem:[%s1 + $0x9e0] sm:$0xff]
  %v347 = vld [vmem:[%s1 + $0x9e8] sm:$0xff]
  %v348 = vld [vmem:[%s1 + $0x9f0] sm:$0xff]
  %v349 = vld [vmem:[%s1 + $0x9f8] sm:$0xff]
  %v350 = vld [vmem:[%s1 + $0xa00] sm:$0xff]
  %v351 = vld [vmem:[%s1 + $0xa08] sm:$0xff]
  %v352 = vld [vmem:[%s1 + $0xa10] sm:$0xff]
  %v353 = vld [vmem:[%s1 + $0xa18] sm:$0xff]
  %v354 = vld [vmem:[%s1 + $0xa20] sm:$0xff]
  %v355 = vld [vmem:[%s1 + $0xa28] sm:$0xff]
  %v356 = vld [vmem:[%s1 + $0xa30] sm:$0xff]
  %v357 = vld [vmem:[%s1 + $0xa38] sm:$0xff]
  %v358 = vld [vmem:[%s1 + $0xa40] sm:$0xff]
  %v359 = vld [vmem:[%s1 + $0xa48] sm:$0xff]
  %v360 = vld [vmem:[%s1 + $0xa50] sm:$0xff]
  %v361 = vld [vmem:[%s1 + $0xa58] sm:$0xff]
  %v362 = vld [vmem:[%s1 + $0xa60] sm:$0xff]
  %v363 = vld [vmem:[%s1 + $0xa68] sm:$0xff]
  %v364 = vld [vmem:[%s1 + $0xa70] sm:$0xff]
  %v365 = vld [vmem:[%s1 + $0xa78] sm:$0xff]
  %v366 = vld [vmem:[%s1 + $0xa80] sm:$0xff]
  %v367 = vld [vmem:[%s1 + $0xa88] sm:$0xff]
  %v368 = vld [vmem:[%s1 + $0xa90] sm:$0xff]
  %v369 = vld [vmem:[%s1 + $0xa98] sm:$0xff]
  %v370 = vld [vmem:[%s1 + $0xaa0] sm:$0xff]
  %v371 = vld [vmem:[%s1 + $0xaa8] sm:$0xff]
  %v372 = vld [vmem:[%s1 + $0xab0] sm:$0xff]
  %v373 = vld [vmem:[%s1 + $0xab8] sm:$0xff]
  %v374 = vld [vmem:[%s1 + $0xac0] sm:$0xff]
  %v375 = vld [vmem:[%s1 + $0xac8] sm:$0xff]
  %v376 = vld [vmem:[%s1 + $0xad0] sm:$0xff]
  %v377 = vld [vmem:[%s1 + $0xad8] sm:$0xff]
  %v378 = vld [vmem:[%s1 + $0xae0] sm:$0xff]
  %v379 = vld [vmem:[%s1 + $0xae8] sm:$0xff]
  %v380 = vld [vmem:[%s1 + $0xaf0] sm:$0xff]
  %v381 = vld [vmem:[%s1 + $0xaf8] sm:$0xff]
  %v382 = vld [vmem:[%s1 + $0xb00] sm:$0xff]
  %v383 = vld [vmem:[%s1 + $0xb08] sm:$0xff]
  %v384 = vld [vmem:[%s1 + $0xb10] sm:$0xff]
  %v385 = vld [vmem:[%s1 + $0xb18] sm:$0xff]
  %v386 = vld [vmem:[%s1 + $0xb20] sm:$0xff]
  %v387 = vld [vmem:[%s1 + $0xb28] sm:$0xff]
  %v388 = vld [vmem:[%s1 + $0xb30] sm:$0xff]
  %v389 = vld [vmem:[%s1 + $0xb38] sm:$0xff]
  %v390 = vld [vmem:[%s1 + $0xb40] sm:$0xff]
  %v391 = vld [vmem:[%s1 + $0xb48] sm:$0xff]
  %v392 = vld [vmem:[%s1 + $0xb50] sm:$0xff]
  %v393 = vld [vmem:[%s1 + $0xb58] sm:$0xff]
  %v394 = vld [vmem:[%s1 + $0xb60] sm:$0xff]
  %v395 = vld [vmem:[%s1 + $0xb68] sm:$0xff]
  %v396 = vld [vmem:[%s1 + $0xb70] sm:$0xff]
  %v397 = vld [vmem:[%s1 + $0xb78] sm:$0xff]
  %v398 = vld [vmem:[%s1 + $0xb80] sm:$0xff]
  %v399 = vld [vmem:[%s1 + $0xb88] sm:$0xff]
  %v400 = vld [vmem:[%s1 + $0xb90] sm:$0xff]
  %v401 = vld [vmem:[%s1 + $0xb98] sm:$0xff]
  %v402 = vld [vmem:[%s1 + $0xba0] sm:$0xff]
  %v403 = vld [vmem:[%s1 + $0xba8] sm:$0xff]
  %v404 = vld [vmem:[%s1 + $0xbb0] sm:$0xff]
  %v405 = vld [vmem:[%s1 + $0xbb8] sm:$0xff]
  %v406 = vld [vmem:[%s1 + $0xbc0] sm:$0xff]
  %v407 = vld [vmem:[%s1 + $0xbc8] sm:$0xff]
  %v408 = vld [vmem:[%s1 + $0xbd0] sm:$0xff]
  %v409 = vld [vmem:[%s1 + $0xbd8] sm:$0xff]
  %v410 = vld [vmem:[%s1 + $0xbe0] sm:$0xff]
  %v411 = vld [vmem:[%s1 + $0xbe8] sm:$0xff]
  %v412 = vld [vmem:[%s1 + $0xbf0] sm:$0xff]
  %v413 = vld [vmem:[%s1 + $0xbf8] sm:$0xff]
  %v414 = vld [vmem:[%s1 + $0xc00] sm:$0xff]
  %v415 = vld [vmem:[%s1 + $0xc08] sm:$0xff]
  %v416 = vld [vmem:[%s1 + $0xc10] sm:$0xff]
  %v417 = vld [vmem:[%s1 + $0xc18] sm:$0xff]
  %v418 = vld [vmem:[%s1 + $0xc20] sm:$0xff]
  %v419 = vld [vmem:[%s1 + $0xc28] sm:$0xff]
  %v420 = vld [vmem:[%s1 + $0xc30] sm:$0xff]
  %v421 = vld [vmem:[%s1 + $0xc38] sm:$0xff]
  %v422 = vld [vmem:[%s1 + $0xc40] sm:$0xff]
  %v423 = vld [vmem:[%s1 + $0xc48] sm:$0xff]
  %v424 = vld [vmem:[%s1 + $0xc50] sm:$0xff]
  %v425 = vld [vmem:[%s1 + $0xc58] sm:$0xff]
  %v426 = vld [vmem:[%s1 + $0xc60] sm:$0xff]
  %v427 = vld [vmem:[%s1 + $0xc68] sm:$0xff]
  %v428 = vld [vmem:[%s1 + $0xc70] sm:$0xff]
  %v429 = vld [vmem:[%s1 + $0xc78] sm:$0xff]
  %v430 = vld [vmem:[%s2] sm:$0xff]
  %v432 = vlaneseq
  %v433 = vshrl.u32 %v432, 7
  %v434 = vsub.s32 0, %v433
  %v435 = vrot.slane %v430, %v434
  %v436 = vlaneseq
  %v437 = vshrl.u32 %v436, 7
  %v438 = vsub.s32 1, %v437
  %v439 = vrot.slane %v430, %v438
  %v440 = vlaneseq
  %v441 = vshrl.u32 %v440, 7
  %v442 = vsub.s32 2, %v441
  %v443 = vrot.slane %v430, %v442
  %v444 = vlaneseq
  %v445 = vshrl.u32 %v444, 7
  %v446 = vsub.s32 3, %v445
  %v447 = vrot.slane %v430, %v446
  %v448 = vlaneseq
  %v449 = vshrl.u32 %v448, 7
  %v450 = vsub.s32 4, %v449
  %v451 = vrot.slane %v430, %v450
  %v452 = vlaneseq
  %v453 = vshrl.u32 %v452, 7
  %v454 = vsub.s32 5, %v453
  %v455 = vrot.slane %v430, %v454
  %v456 = vlaneseq
  %v457 = vshrl.u32 %v456, 7
  %v458 = vsub.s32 6, %v457
  %v459 = vrot.slane %v430, %v458
  %v460 = vlaneseq
  %v461 = vshrl.u32 %v460, 7
  %v462 = vsub.s32 7, %v461
  %v463 = vrot.slane %v430, %v462
  %vm472 = vcmask 130048
  %v474 = vsel %vm472, %v29, 0
  %476 = vmatprep.subr.mxu0 %v151
  %477 = vmatpush1.msra.mxu0 %v150
  %478 = vmatprep.subr.mxu0 %v143
  %479 = vmatpush1.msra.mxu0 %v142
  %480 = vmatprep.subr.mxu0 %v135
  %481 = vmatpush1.msra.mxu0 %v134
  %482 = vmatprep.subr.mxu0 %v127
  %483 = vmatpush1.msra.mxu0 %v126
  %484 = vmatprep.subr.mxu0 %v119
  %485 = vmatpush1.msra.mxu0 %v118
  %486 = vmatprep.subr.mxu0 %v111
  %487 = vmatpush1.msra.mxu0 %v110
  %488 = vmatprep.subr.mxu0 %v103
  %489 = vmatpush1.msra.mxu0 %v102
  %490 = vmatprep.subr.mxu0 %v95
  %491 = vmatpush1.msra.mxu0 %v94
  %492 = vmatprep.subr.mxu0 %v87
  %493 = vmatpush1.msra.mxu0 %v86
  %494 = vmatprep.subr.mxu0 %v79
  %495 = vmatpush1.msra.mxu0 %v78
  %496 = vmatprep.subr.mxu0 %v71
  %497 = vmatpush1.msra.mxu0 %v70
  %498 = vmatprep.subr.mxu0 %v63
  %499 = vmatpush1.msra.mxu0 %v62
  %500 = vmatprep.subr.mxu0 %v55
  %501 = vmatpush1.msra.mxu0 %v54
  %502 = vmatprep.subr.mxu0 %v47
  %503 = vmatpush1.msra.mxu0 %v46
  %504 = vmatprep.subr.mxu0 %v39
  %505 = vmatpush1.msra.mxu0 %v38
  %506 = vmatprep.subr.mxu0 %v31
  %507 = vmatpush1.msra.mxu0 %v30
  %508 = vmatprep.subr.mxu0 %v279
  %509 = vmatpush2.msra.mxu0 %v278
  %510 = vmatprep.subr.mxu0 %v271
  %511 = vmatpush2.msra.mxu0 %v270
  %512 = vmatprep.subr.mxu0 %v263
  %513 = vmatpush2.msra.mxu0 %v262
  %514 = vmatprep.subr.mxu0 %v255
  %515 = vmatpush2.msra.mxu0 %v254
  %516 = vmatprep.subr.mxu0 %v247
  %517 = vmatpush2.msra.mxu0 %v246
  %518 = vmatprep.subr.mxu0 %v239
  %519 = vmatpush2.msra.mxu0 %v238
  %520 = vmatprep.subr.mxu0 %v231
  %521 = vmatpush2.msra.mxu0 %v230
  %522 = vmatprep.subr.mxu0 %v223
  %523 = vmatpush2.msra.mxu0 %v222
  %524 = vmatprep.subr.mxu0 %v215
  %525 = vmatpush2.msra.mxu0 %v214
  %526 = vmatprep.subr.mxu0 %v207
  %527 = vmatpush2.msra.mxu0 %v206
  %528 = vmatprep.subr.mxu0 %v199
  %529 = vmatpush2.msra.mxu0 %v198
  %530 = vmatprep.subr.mxu0 %v191
  %531 = vmatpush2.msra.mxu0 %v190
  %532 = vmatprep.subr.mxu0 %v183
  %533 = vmatpush2.msra.mxu0 %v182
  %534 = vmatprep.subr.mxu0 %v175
  %535 = vmatpush2.msra.mxu0 %v174
  %536 = vmatprep.subr.mxu0 %v167
  %537 = vmatpush2.msra.mxu0 %v166
  %538 = vmatprep.subr.mxu0 %v159
  %539 = vmatpush2.msra.mxu0 %v158
  %540 = vmatprep.mubr.f32.mxu0 %v27
  %541 = vmatmul.mubr.f32.gmra.mxu0 %v26
  %v542 = vpop.f32.mrf.mxu0
  %v543 = vadd.f32 %v435, %v542
  %v544 = vpop.f32.mrf.mxu0
  %v545 = vadd.f32 %v439, %v544
  %546 = vdwg.mxu0
  %547 = vmatprep.subr.mxu0 %v407
  %548 = vmatpush1.msra.mxu0 %v406
  %549 = vmatprep.subr.mxu0 %v399
  %550 = vmatpush1.msra.mxu0 %v398
  %551 = vmatprep.subr.mxu0 %v391
  %552 = vmatpush1.msra.mxu0 %v390
  %553 = vmatprep.subr.mxu0 %v383
  %554 = vmatpush1.msra.mxu0 %v382
  %555 = vmatprep.subr.mxu0 %v375
  %556 = vmatpush1.msra.mxu0 %v374
  %557 = vmatprep.subr.mxu0 %v367
  %558 = vmatpush1.msra.mxu0 %v366
  %559 = vmatprep.subr.mxu0 %v359
  %560 = vmatpush1.msra.mxu0 %v358
  %561 = vmatprep.subr.mxu0 %v351
  %562 = vmatpush1.msra.mxu0 %v350
  %563 = vmatprep.subr.mxu0 %v343
  %564 = vmatpush1.msra.mxu0 %v342
  %565 = vmatprep.subr.mxu0 %v335
  %566 = vmatpush1.msra.mxu0 %v334
  %567 = vmatprep.subr.mxu0 %v327
  %568 = vmatpush1.msra.mxu0 %v326
  %569 = vmatprep.subr.mxu0 %v319
  %570 = vmatpush1.msra.mxu0 %v318
  %571 = vmatprep.subr.mxu0 %v311
  %572 = vmatpush1.msra.mxu0 %v310
  %573 = vmatprep.subr.mxu0 %v303
  %574 = vmatpush1.msra.mxu0 %v302
  %575 = vmatprep.subr.mxu0 %v295
  %576 = vmatpush1.msra.mxu0 %v294
  %577 = vmatprep.subr.mxu0 %v287
  %578 = vmatpush1.msra.mxu0 %v286
  %579 = vmatprep.subr.mxu0 0.0
  %580 = vmatpush2.msra.mxu0 0.0
  %581 = vmatprep.subr.mxu0 0.0
  %582 = vmatpush2.msra.mxu0 0.0
  %583 = vmatprep.subr.mxu0 0.0
  %584 = vmatpush2.msra.mxu0 0.0
  %585 = vmatprep.subr.mxu0 0.0
  %586 = vmatpush2.msra.mxu0 0.0
  %587 = vmatprep.subr.mxu0 0.0
  %588 = vmatpush2.msra.mxu0 0.0
  %589 = vmatprep.subr.mxu0 0.0
  %590 = vmatpush2.msra.mxu0 0.0
  %591 = vmatprep.subr.mxu0 0.0
  %592 = vmatpush2.msra.mxu0 0.0
  %593 = vmatprep.subr.mxu0 0.0
  %594 = vmatpush2.msra.mxu0 0.0
  %595 = vmatprep.subr.mxu0 0.0
  %596 = vmatpush2.msra.mxu0 0.0
  %597 = vmatprep.subr.mxu0 0.0
  %598 = vmatpush2.msra.mxu0 0.0
  %599 = vmatprep.subr.mxu0 0.0
  %600 = vmatpush2.msra.mxu0 0.0
  %601 = vmatprep.subr.mxu0 0.0
  %602 = vmatpush2.msra.mxu0 0.0
  %603 = vmatprep.subr.mxu0 0.0
  %604 = vmatpush2.msra.mxu0 0.0
  %605 = vmatprep.subr.mxu0 0.0
  %606 = vmatpush2.msra.mxu0 0.0
  %607 = vmatprep.subr.mxu0 %v423
  %608 = vmatpush2.msra.mxu0 %v422
  %609 = vmatprep.subr.mxu0 %v415
  %610 = vmatpush2.msra.mxu0 %v414
  %611 = vmatprep.mubr.f32.mxu0 %v474
  %612 = vmatmul.mubr.f32.gmra.mxu0 %v28
  %v613 = vpop.f32.mrf.mxu0
  %v614 = vadd.f32 %v543, %v613
  %v615 = vpop.f32.mrf.mxu0
  %v616 = vadd.f32 %v545, %v615
  %617 = vdwg.mxu0
  %618 = vmatprep.subr.mxu0 %v153
  %619 = vmatpush1.msra.mxu0 %v152
  %620 = vmatprep.subr.mxu0 %v145
  %621 = vmatpush1.msra.mxu0 %v144
  %622 = vmatprep.subr.mxu0 %v137
  %623 = vmatpush1.msra.mxu0 %v136
  %624 = vmatprep.subr.mxu0 %v129
  %625 = vmatpush1.msra.mxu0 %v128
  %626 = vmatprep.subr.mxu0 %v121
  %627 = vmatpush1.msra.mxu0 %v120
  %628 = vmatprep.subr.mxu0 %v113
  %629 = vmatpush1.msra.mxu0 %v112
  %630 = vmatprep.subr.mxu0 %v105
  %631 = vmatpush1.msra.mxu0 %v104
  %632 = vmatprep.subr.mxu0 %v97
  %633 = vmatpush1.msra.mxu0 %v96
  %634 = vmatprep.subr.mxu0 %v89
  %635 = vmatpush1.msra.mxu0 %v88
  %636 = vmatprep.subr.mxu0 %v81
  %637 = vmatpush1.msra.mxu0 %v80
  %638 = vmatprep.subr.mxu0 %v73
  %639 = vmatpush1.msra.mxu0 %v72
  %640 = vmatprep.subr.mxu0 %v65
  %641 = vmatpush1.msra.mxu0 %v64
  %642 = vmatprep.subr.mxu0 %v57
  %643 = vmatpush1.msra.mxu0 %v56
  %644 = vmatprep.subr.mxu0 %v49
  %645 = vmatpush1.msra.mxu0 %v48
  %646 = vmatprep.subr.mxu0 %v41
  %647 = vmatpush1.msra.mxu0 %v40
  %648 = vmatprep.subr.mxu0 %v33
  %649 = vmatpush1.msra.mxu0 %v32
  %650 = vmatprep.subr.mxu0 %v281
  %651 = vmatpush2.msra.mxu0 %v280
  %652 = vmatprep.subr.mxu0 %v273
  %653 = vmatpush2.msra.mxu0 %v272
  %654 = vmatprep.subr.mxu0 %v265
  %655 = vmatpush2.msra.mxu0 %v264
  %656 = vmatprep.subr.mxu0 %v257
  %657 = vmatpush2.msra.mxu0 %v256
  %658 = vmatprep.subr.mxu0 %v249
  %659 = vmatpush2.msra.mxu0 %v248
  %660 = vmatprep.subr.mxu0 %v241
  %661 = vmatpush2.msra.mxu0 %v240
  %662 = vmatprep.subr.mxu0 %v233
  %663 = vmatpush2.msra.mxu0 %v232
  %664 = vmatprep.subr.mxu0 %v225
  %665 = vmatpush2.msra.mxu0 %v224
  %666 = vmatprep.subr.mxu0 %v217
  %667 = vmatpush2.msra.mxu0 %v216
  %668 = vmatprep.subr.mxu0 %v209
  %669 = vmatpush2.msra.mxu0 %v208
  %670 = vmatprep.subr.mxu0 %v201
  %671 = vmatpush2.msra.mxu0 %v200
  %672 = vmatprep.subr.mxu0 %v193
  %673 = vmatpush2.msra.mxu0 %v192
  %674 = vmatprep.subr.mxu0 %v185
  %675 = vmatpush2.msra.mxu0 %v184
  %676 = vmatprep.subr.mxu0 %v177
  %677 = vmatpush2.msra.mxu0 %v176
  %678 = vmatprep.subr.mxu0 %v169
  %679 = vmatpush2.msra.mxu0 %v168
  %680 = vmatprep.subr.mxu0 %v161
  %681 = vmatpush2.msra.mxu0 %v160
  %682 = vmatprep.mubr.f32.mxu0 %v27
  %683 = vmatmul.mubr.f32.gmra.mxu0 %v26
  %v684 = vpop.f32.mrf.mxu0
  %v685 = vadd.f32 %v443, %v684
  %v686 = vpop.f32.mrf.mxu0
  %v687 = vadd.f32 %v447, %v686
  %688 = vdwg.mxu0
  %689 = vmatprep.subr.mxu0 %v409
  %690 = vmatpush1.msra.mxu0 %v408
  %691 = vmatprep.subr.mxu0 %v401
  %692 = vmatpush1.msra.mxu0 %v400
  %693 = vmatprep.subr.mxu0 %v393
  %694 = vmatpush1.msra.mxu0 %v392
  %695 = vmatprep.subr.mxu0 %v385
  %696 = vmatpush1.msra.mxu0 %v384
  %697 = vmatprep.subr.mxu0 %v377
  %698 = vmatpush1.msra.mxu0 %v376
  %699 = vmatprep.subr.mxu0 %v369
  %700 = vmatpush1.msra.mxu0 %v368
  %701 = vmatprep.subr.mxu0 %v361
  %702 = vmatpush1.msra.mxu0 %v360
  %703 = vmatprep.subr.mxu0 %v353
  %704 = vmatpush1.msra.mxu0 %v352
  %705 = vmatprep.subr.mxu0 %v345
  %706 = vmatpush1.msra.mxu0 %v344
  %707 = vmatprep.subr.mxu0 %v337
  %708 = vmatpush1.msra.mxu0 %v336
  %709 = vmatprep.subr.mxu0 %v329
  %710 = vmatpush1.msra.mxu0 %v328
  %711 = vmatprep.subr.mxu0 %v321
  %712 = vmatpush1.msra.mxu0 %v320
  %713 = vmatprep.subr.mxu0 %v313
  %714 = vmatpush1.msra.mxu0 %v312
  %715 = vmatprep.subr.mxu0 %v305
  %716 = vmatpush1.msra.mxu0 %v304
  %717 = vmatprep.subr.mxu0 %v297
  %718 = vmatpush1.msra.mxu0 %v296
  %719 = vmatprep.subr.mxu0 %v289
  %720 = vmatpush1.msra.mxu0 %v288
  %721 = vmatprep.subr.mxu0 0.0
  %722 = vmatpush2.msra.mxu0 0.0
  %723 = vmatprep.subr.mxu0 0.0
  %724 = vmatpush2.msra.mxu0 0.0
  %725 = vmatprep.subr.mxu0 0.0
  %726 = vmatpush2.msra.mxu0 0.0
  %727 = vmatprep.subr.mxu0 0.0
  %728 = vmatpush2.msra.mxu0 0.0
  %729 = vmatprep.subr.mxu0 0.0
  %730 = vmatpush2.msra.mxu0 0.0
  %731 = vmatprep.subr.mxu0 0.0
  %732 = vmatpush2.msra.mxu0 0.0
  %733 = vmatprep.subr.mxu0 0.0
  %734 = vmatpush2.msra.mxu0 0.0
  %735 = vmatprep.subr.mxu0 0.0
  %736 = vmatpush2.msra.mxu0 0.0
  %737 = vmatprep.subr.mxu0 0.0
  %738 = vmatpush2.msra.mxu0 0.0
  %739 = vmatprep.subr.mxu0 0.0
  %740 = vmatpush2.msra.mxu0 0.0
  %741 = vmatprep.subr.mxu0 0.0
  %742 = vmatpush2.msra.mxu0 0.0
  %743 = vmatprep.subr.mxu0 0.0
  %744 = vmatpush2.msra.mxu0 0.0
  %745 = vmatprep.subr.mxu0 0.0
  %746 = vmatpush2.msra.mxu0 0.0
  %747 = vmatprep.subr.mxu0 0.0
  %748 = vmatpush2.msra.mxu0 0.0
  %749 = vmatprep.subr.mxu0 %v425
  %750 = vmatpush2.msra.mxu0 %v424
  %751 = vmatprep.subr.mxu0 %v417
  %752 = vmatpush2.msra.mxu0 %v416
  %753 = vmatprep.mubr.f32.mxu0 %v474
  %754 = vmatmul.mubr.f32.gmra.mxu0 %v28
  %v755 = vpop.f32.mrf.mxu0
  %v756 = vadd.f32 %v685, %v755
  %v757 = vpop.f32.mrf.mxu0
  %v758 = vadd.f32 %v687, %v757
  %759 = vdwg.mxu0
  %760 = vmatprep.subr.mxu0 %v155
  %761 = vmatpush1.msra.mxu0 %v154
  %762 = vmatprep.subr.mxu0 %v147
  %763 = vmatpush1.msra.mxu0 %v146
  %764 = vmatprep.subr.mxu0 %v139
  %765 = vmatpush1.msra.mxu0 %v138
  %766 = vmatprep.subr.mxu0 %v131
  %767 = vmatpush1.msra.mxu0 %v130
  %768 = vmatprep.subr.mxu0 %v123
  %769 = vmatpush1.msra.mxu0 %v122
  %770 = vmatprep.subr.mxu0 %v115
  %771 = vmatpush1.msra.mxu0 %v114
  %772 = vmatprep.subr.mxu0 %v107
  %773 = vmatpush1.msra.mxu0 %v106
  %774 = vmatprep.subr.mxu0 %v99
  %775 = vmatpush1.msra.mxu0 %v98
  %776 = vmatprep.subr.mxu0 %v91
  %777 = vmatpush1.msra.mxu0 %v90
  %778 = vmatprep.subr.mxu0 %v83
  %779 = vmatpush1.msra.mxu0 %v82
  %780 = vmatprep.subr.mxu0 %v75
  %781 = vmatpush1.msra.mxu0 %v74
  %782 = vmatprep.subr.mxu0 %v67
  %783 = vmatpush1.msra.mxu0 %v66
  %784 = vmatprep.subr.mxu0 %v59
  %785 = vmatpush1.msra.mxu0 %v58
  %786 = vmatprep.subr.mxu0 %v51
  %787 = vmatpush1.msra.mxu0 %v50
  %788 = vmatprep.subr.mxu0 %v43
  %789 = vmatpush1.msra.mxu0 %v42
  %790 = vmatprep.subr.mxu0 %v35
  %791 = vmatpush1.msra.mxu0 %v34
  %792 = vmatprep.subr.mxu0 %v283
  %793 = vmatpush2.msra.mxu0 %v282
  %794 = vmatprep.subr.mxu0 %v275
  %795 = vmatpush2.msra.mxu0 %v274
  %796 = vmatprep.subr.mxu0 %v267
  %797 = vmatpush2.msra.mxu0 %v266
  %798 = vmatprep.subr.mxu0 %v259
  %799 = vmatpush2.msra.mxu0 %v258
  %800 = vmatprep.subr.mxu0 %v251
  %801 = vmatpush2.msra.mxu0 %v250
  %802 = vmatprep.subr.mxu0 %v243
  %803 = vmatpush2.msra.mxu0 %v242
  %804 = vmatprep.subr.mxu0 %v235
  %805 = vmatpush2.msra.mxu0 %v234
  %806 = vmatprep.subr.mxu0 %v227
  %807 = vmatpush2.msra.mxu0 %v226
  %808 = vmatprep.subr.mxu0 %v219
  %809 = vmatpush2.msra.mxu0 %v218
  %810 = vmatprep.subr.mxu0 %v211
  %811 = vmatpush2.msra.mxu0 %v210
  %812 = vmatprep.subr.mxu0 %v203
  %813 = vmatpush2.msra.mxu0 %v202
  %814 = vmatprep.subr.mxu0 %v195
  %815 = vmatpush2.msra.mxu0 %v194
  %816 = vmatprep.subr.mxu0 %v187
  %817 = vmatpush2.msra.mxu0 %v186
  %818 = vmatprep.subr.mxu0 %v179
  %819 = vmatpush2.msra.mxu0 %v178
  %820 = vmatprep.subr.mxu0 %v171
  %821 = vmatpush2.msra.mxu0 %v170
  %822 = vmatprep.subr.mxu0 %v163
  %823 = vmatpush2.msra.mxu0 %v162
  %824 = vmatprep.mubr.f32.mxu0 %v27
  %825 = vmatmul.mubr.f32.gmra.mxu0 %v26
  %v826 = vpop.f32.mrf.mxu0
  %v827 = vadd.f32 %v451, %v826
  %v828 = vpop.f32.mrf.mxu0
  %v829 = vadd.f32 %v455, %v828
  %830 = vdwg.mxu0
  %831 = vmatprep.subr.mxu0 %v411
  %832 = vmatpush1.msra.mxu0 %v410
  %833 = vmatprep.subr.mxu0 %v403
  %834 = vmatpush1.msra.mxu0 %v402
  %835 = vmatprep.subr.mxu0 %v395
  %836 = vmatpush1.msra.mxu0 %v394
  %837 = vmatprep.subr.mxu0 %v387
  %838 = vmatpush1.msra.mxu0 %v386
  %839 = vmatprep.subr.mxu0 %v379
  %840 = vmatpush1.msra.mxu0 %v378
  %841 = vmatprep.subr.mxu0 %v371
  %842 = vmatpush1.msra.mxu0 %v370
  %843 = vmatprep.subr.mxu0 %v363
  %844 = vmatpush1.msra.mxu0 %v362
  %845 = vmatprep.subr.mxu0 %v355
  %846 = vmatpush1.msra.mxu0 %v354
  %847 = vmatprep.subr.mxu0 %v347
  %848 = vmatpush1.msra.mxu0 %v346
  %849 = vmatprep.subr.mxu0 %v339
  %850 = vmatpush1.msra.mxu0 %v338
  %851 = vmatprep.subr.mxu0 %v331
  %852 = vmatpush1.msra.mxu0 %v330
  %853 = vmatprep.subr.mxu0 %v323
  %854 = vmatpush1.msra.mxu0 %v322
  %855 = vmatprep.subr.mxu0 %v315
  %856 = vmatpush1.msra.mxu0 %v314
  %857 = vmatprep.subr.mxu0 %v307
  %858 = vmatpush1.msra.mxu0 %v306
  %859 = vmatprep.subr.mxu0 %v299
  %860 = vmatpush1.msra.mxu0 %v298
  %861 = vmatprep.subr.mxu0 %v291
  %862 = vmatpush1.msra.mxu0 %v290
  %863 = vmatprep.subr.mxu0 0.0
  %864 = vmatpush2.msra.mxu0 0.0
  %865 = vmatprep.subr.mxu0 0.0
  %866 = vmatpush2.msra.mxu0 0.0
  %867 = vmatprep.subr.mxu0 0.0
  %868 = vmatpush2.msra.mxu0 0.0
  %869 = vmatprep.subr.mxu0 0.0
  %870 = vmatpush2.msra.mxu0 0.0
  %871 = vmatprep.subr.mxu0 0.0
  %872 = vmatpush2.msra.mxu0 0.0
  %873 = vmatprep.subr.mxu0 0.0
  %874 = vmatpush2.msra.mxu0 0.0
  %875 = vmatprep.subr.mxu0 0.0
  %876 = vmatpush2.msra.mxu0 0.0
  %877 = vmatprep.subr.mxu0 0.0
  %878 = vmatpush2.msra.mxu0 0.0
  %879 = vmatprep.subr.mxu0 0.0
  %880 = vmatpush2.msra.mxu0 0.0
  %881 = vmatprep.subr.mxu0 0.0
  %882 = vmatpush2.msra.mxu0 0.0
  %883 = vmatprep.subr.mxu0 0.0
  %884 = vmatpush2.msra.mxu0 0.0
  %885 = vmatprep.subr.mxu0 0.0
  %886 = vmatpush2.msra.mxu0 0.0
  %887 = vmatprep.subr.mxu0 0.0
  %888 = vmatpush2.msra.mxu0 0.0
  %889 = vmatprep.subr.mxu0 0.0
  %890 = vmatpush2.msra.mxu0 0.0
  %891 = vmatprep.subr.mxu0 %v427
  %892 = vmatpush2.msra.mxu0 %v426
  %893 = vmatprep.subr.mxu0 %v419
  %894 = vmatpush2.msra.mxu0 %v418
  %895 = vmatprep.mubr.f32.mxu0 %v474
  %896 = vmatmul.mubr.f32.gmra.mxu0 %v28
  %v897 = vpop.f32.mrf.mxu0
  %v898 = vadd.f32 %v827, %v897
  %v899 = vpop.f32.mrf.mxu0
  %v900 = vadd.f32 %v829, %v899
  %901 = vdwg.mxu0
  %902 = vmatprep.subr.mxu0 %v157
  %903 = vmatpush1.msra.mxu0 %v156
  %904 = vmatprep.subr.mxu0 %v149
  %905 = vmatpush1.msra.mxu0 %v148
  %906 = vmatprep.subr.mxu0 %v141
  %907 = vmatpush1.msra.mxu0 %v140
  %908 = vmatprep.subr.mxu0 %v133
  %909 = vmatpush1.msra.mxu0 %v132
  %910 = vmatprep.subr.mxu0 %v125
  %911 = vmatpush1.msra.mxu0 %v124
  %912 = vmatprep.subr.mxu0 %v117
  %913 = vmatpush1.msra.mxu0 %v116
  %914 = vmatprep.subr.mxu0 %v109
  %915 = vmatpush1.msra.mxu0 %v108
  %916 = vmatprep.subr.mxu0 %v101
  %917 = vmatpush1.msra.mxu0 %v100
  %918 = vmatprep.subr.mxu0 %v93
  %919 = vmatpush1.msra.mxu0 %v92
  %920 = vmatprep.subr.mxu0 %v85
  %921 = vmatpush1.msra.mxu0 %v84
  %922 = vmatprep.subr.mxu0 %v77
  %923 = vmatpush1.msra.mxu0 %v76
  %924 = vmatprep.subr.mxu0 %v69
  %925 = vmatpush1.msra.mxu0 %v68
  %926 = vmatprep.subr.mxu0 %v61
  %927 = vmatpush1.msra.mxu0 %v60
  %928 = vmatprep.subr.mxu0 %v53
  %929 = vmatpush1.msra.mxu0 %v52
  %930 = vmatprep.subr.mxu0 %v45
  %931 = vmatpush1.msra.mxu0 %v44
  %932 = vmatprep.subr.mxu0 %v37
  %933 = vmatpush1.msra.mxu0 %v36
  %934 = vmatprep.subr.mxu0 %v285
  %935 = vmatpush2.msra.mxu0 %v284
  %936 = vmatprep.subr.mxu0 %v277
  %937 = vmatpush2.msra.mxu0 %v276
  %938 = vmatprep.subr.mxu0 %v269
  %939 = vmatpush2.msra.mxu0 %v268
  %940 = vmatprep.subr.mxu0 %v261
  %941 = vmatpush2.msra.mxu0 %v260
  %942 = vmatprep.subr.mxu0 %v253
  %943 = vmatpush2.msra.mxu0 %v252
  %944 = vmatprep.subr.mxu0 %v245
  %945 = vmatpush2.msra.mxu0 %v244
  %946 = vmatprep.subr.mxu0 %v237
  %947 = vmatpush2.msra.mxu0 %v236
  %948 = vmatprep.subr.mxu0 %v229
  %949 = vmatpush2.msra.mxu0 %v228
  %950 = vmatprep.subr.mxu0 %v221
  %951 = vmatpush2.msra.mxu0 %v220
  %952 = vmatprep.subr.mxu0 %v213
  %953 = vmatpush2.msra.mxu0 %v212
  %954 = vmatprep.subr.mxu0 %v205
  %955 = vmatpush2.msra.mxu0 %v204
  %956 = vmatprep.subr.mxu0 %v197
  %957 = vmatpush2.msra.mxu0 %v196
  %958 = vmatprep.subr.mxu0 %v189
  %959 = vmatpush2.msra.mxu0 %v188
  %960 = vmatprep.subr.mxu0 %v181
  %961 = vmatpush2.msra.mxu0 %v180
  %962 = vmatprep.subr.mxu0 %v173
  %963 = vmatpush2.msra.mxu0 %v172
  %964 = vmatprep.subr.mxu0 %v165
  %965 = vmatpush2.msra.mxu0 %v164
  %966 = vmatprep.mubr.f32.mxu0 %v27
  %967 = vmatmul.mubr.f32.gmra.mxu0 %v26
  %v968 = vpop.f32.mrf.mxu0
  %v969 = vadd.f32 %v459, %v968
  %v970 = vpop.f32.mrf.mxu0
  %v971 = vadd.f32 %v463, %v970
  %972 = vdwg.mxu0
  %973 = vmatprep.subr.mxu0 %v413
  %974 = vmatpush1.msra.mxu0 %v412
  %975 = vmatprep.subr.mxu0 %v405
  %976 = vmatpush1.msra.mxu0 %v404
  %977 = vmatprep.subr.mxu0 %v397
  %978 = vmatpush1.msra.mxu0 %v396
  %979 = vmatprep.subr.mxu0 %v389
  %980 = vmatpush1.msra.mxu0 %v388
  %981 = vmatprep.subr.mxu0 %v381
  %982 = vmatpush1.msra.mxu0 %v380
  %983 = vmatprep.subr.mxu0 %v373
  %984 = vmatpush1.msra.mxu0 %v372
  %985 = vmatprep.subr.mxu0 %v365
  %986 = vmatpush1.msra.mxu0 %v364
  %987 = vmatprep.subr.mxu0 %v357
  %988 = vmatpush1.msra.mxu0 %v356
  %989 = vmatprep.subr.mxu0 %v349
  %990 = vmatpush1.msra.mxu0 %v348
  %991 = vmatprep.subr.mxu0 %v341
  %992 = vmatpush1.msra.mxu0 %v340
  %993 = vmatprep.subr.mxu0 %v333
  %994 = vmatpush1.msra.mxu0 %v332
  %995 = vmatprep.subr.mxu0 %v325
  %996 = vmatpush1.msra.mxu0 %v324
  %997 = vmatprep.subr.mxu0 %v317
  %998 = vmatpush1.msra.mxu0 %v316
  %999 = vmatprep.subr.mxu0 %v309
  %1000 = vmatpush1.msra.mxu0 %v308
  %1001 = vmatprep.subr.mxu0 %v301
  %1002 = vmatpush1.msra.mxu0 %v300
  %1003 = vmatprep.subr.mxu0 %v293
  %1004 = vmatpush1.msra.mxu0 %v292
  %1005 = vmatprep.subr.mxu0 0.0
  %1006 = vmatpush2.msra.mxu0 0.0
  %1007 = vmatprep.subr.mxu0 0.0
  %1008 = vmatpush2.msra.mxu0 0.0
  %1009 = vmatprep.subr.mxu0 0.0
  %1010 = vmatpush2.msra.mxu0 0.0
  %1011 = vmatprep.subr.mxu0 0.0
  %1012 = vmatpush2.msra.mxu0 0.0
  %1013 = vmatprep.subr.mxu0 0.0
  %1014 = vmatpush2.msra.mxu0 0.0
  %1015 = vmatprep.subr.mxu0 0.0
  %1016 = vmatpush2.msra.mxu0 0.0
  %1017 = vmatprep.subr.mxu0 0.0
  %1018 = vmatpush2.msra.mxu0 0.0
  %1019 = vmatprep.subr.mxu0 0.0
  %1020 = vmatpush2.msra.mxu0 0.0
  %1021 = vmatprep.subr.mxu0 0.0
  %1022 = vmatpush2.msra.mxu0 0.0
  %1023 = vmatprep.subr.mxu0 0.0
  %1024 = vmatpush2.msra.mxu0 0.0
  %1025 = vmatprep.subr.mxu0 0.0
  %1026 = vmatpush2.msra.mxu0 0.0
  %1027 = vmatprep.subr.mxu0 0.0
  %1028 = vmatpush2.msra.mxu0 0.0
  %1029 = vmatprep.subr.mxu0 0.0
  %1030 = vmatpush2.msra.mxu0 0.0
  %1031 = vmatprep.subr.mxu0 0.0
  %1032 = vmatpush2.msra.mxu0 0.0
  %1033 = vmatprep.subr.mxu0 %v429
  %1034 = vmatpush2.msra.mxu0 %v428
  %1035 = vmatprep.subr.mxu0 %v421
  %1036 = vmatpush2.msra.mxu0 %v420
  %1037 = vmatprep.mubr.f32.mxu0 %v474
  %1038 = vmatmul.mubr.f32.gmra.mxu0 %v28
  %v1039 = vpop.f32.mrf.mxu0
  %v1040 = vadd.f32 %v969, %v1039
  %v1041 = vpop.f32.mrf.mxu0
  %v1042 = vadd.f32 %v971, %v1041
  %1043 = vdwg.mxu0
  %v1044 = vxor.u32 %v614, 2147483648
  %v1045 = vxor.u32 %v616, 2147483648
  %v1046 = vxor.u32 %v756, 2147483648
  %v1047 = vxor.u32 %v758, 2147483648
  %v1048 = vxor.u32 %v898, 2147483648
  %v1049 = vxor.u32 %v900, 2147483648
  %v1050 = vxor.u32 %v1040, 2147483648
  %v1051 = vxor.u32 %v1042, 2147483648
  %v1052 = vmul.f32 %v1044, 1.442695
  %v1053 = vpow.pop %v1052
  %v1054 = vmul.f32 %v1045, 1.442695
  %v1055 = vpow.pop %v1054
  %v1056 = vmul.f32 %v1046, 1.442695
  %v1057 = vpow.pop %v1056
  %v1058 = vmul.f32 %v1047, 1.442695
  %v1059 = vpow.pop %v1058
  %v1060 = vmul.f32 %v1048, 1.442695
  %v1061 = vpow.pop %v1060
  %v1062 = vmul.f32 %v1049, 1.442695
  %v1063 = vpow.pop %v1062
  %v1064 = vmul.f32 %v1050, 1.442695
  %v1065 = vpow.pop %v1064
  %v1066 = vmul.f32 %v1051, 1.442695
  %v1067 = vpow.pop %v1066
  %v1068 = vadd.f32 %v1053, 1.0
  %v1069 = vadd.f32 %v1055, 1.0
  %v1070 = vadd.f32 %v1057, 1.0
  %v1071 = vadd.f32 %v1059, 1.0
  %v1072 = vadd.f32 %v1061, 1.0
  %v1073 = vadd.f32 %v1063, 1.0
  %v1074 = vadd.f32 %v1065, 1.0
  %v1075 = vadd.f32 %v1067, 1.0
  %v1076 = vrcp.pop %v1068
  %v1077 = vmul.f32 1.0, %v1076
  %v1078 = vrcp.pop %v1069
  %v1079 = vmul.f32 1.0, %v1078
  %v1080 = vrcp.pop %v1070
  %v1081 = vmul.f32 1.0, %v1080
  %v1082 = vrcp.pop %v1071
  %v1083 = vmul.f32 1.0, %v1082
  %v1084 = vrcp.pop %v1072
  %v1085 = vmul.f32 1.0, %v1084
  %v1086 = vrcp.pop %v1073
  %v1087 = vmul.f32 1.0, %v1086
  %v1088 = vrcp.pop %v1074
  %v1089 = vmul.f32 1.0, %v1088
  %v1090 = vrcp.pop %v1075
  %v1091 = vmul.f32 1.0, %v1090
  %v1092 = vmul.f32 %v614, %v1077
  %v1093 = vmul.f32 %v616, %v1079
  %v1094 = vmul.f32 %v756, %v1081
  %v1095 = vmul.f32 %v758, %v1083
  %v1096 = vmul.f32 %v898, %v1085
  %v1097 = vmul.f32 %v900, %v1087
  %v1098 = vmul.f32 %v1040, %v1089
  %v1099 = vmul.f32 %v1042, %v1091
  %v1100 = vld [vmem:[%s3] sm:$0xff]
  %v1101 = vld [vmem:[%s3 + $0x8] sm:$0xff]
  %v1102 = vld [vmem:[%s3 + $0x10] sm:$0xff]
  %v1103 = vld [vmem:[%s3 + $0x18] sm:$0xff]
  %v1104 = vld [vmem:[%s3 + $0x20] sm:$0xff]
  %v1105 = vld [vmem:[%s3 + $0x28] sm:$0xff]
  %v1106 = vld [vmem:[%s3 + $0x30] sm:$0xff]
  %v1107 = vld [vmem:[%s3 + $0x38] sm:$0xff]
  %v1108 = vld [vmem:[%s3 + $0x40] sm:$0xff]
  %v1109 = vld [vmem:[%s3 + $0x48] sm:$0xff]
  %v1110 = vld [vmem:[%s3 + $0x50] sm:$0xff]
  %v1111 = vld [vmem:[%s3 + $0x58] sm:$0xff]
  %v1112 = vld [vmem:[%s3 + $0x60] sm:$0xff]
  %v1113 = vld [vmem:[%s3 + $0x68] sm:$0xff]
  %v1114 = vld [vmem:[%s3 + $0x70] sm:$0xff]
  %v1115 = vld [vmem:[%s3 + $0x78] sm:$0xff]
  %v1116 = vld [vmem:[%s3 + $0x80] sm:$0xff]
  %v1117 = vld [vmem:[%s3 + $0x88] sm:$0xff]
  %v1118 = vld [vmem:[%s3 + $0x90] sm:$0xff]
  %v1119 = vld [vmem:[%s3 + $0x98] sm:$0xff]
  %v1120 = vld [vmem:[%s3 + $0xa0] sm:$0xff]
  %v1121 = vld [vmem:[%s3 + $0xa8] sm:$0xff]
  %v1122 = vld [vmem:[%s3 + $0xb0] sm:$0xff]
  %v1123 = vld [vmem:[%s3 + $0xb8] sm:$0xff]
  %v1124 = vld [vmem:[%s3 + $0xc0] sm:$0xff]
  %v1125 = vld [vmem:[%s3 + $0xc8] sm:$0xff]
  %v1126 = vld [vmem:[%s3 + $0xd0] sm:$0xff]
  %v1127 = vld [vmem:[%s3 + $0xd8] sm:$0xff]
  %v1128 = vld [vmem:[%s3 + $0xe0] sm:$0xff]
  %v1129 = vld [vmem:[%s3 + $0xe8] sm:$0xff]
  %v1130 = vld [vmem:[%s3 + $0xf0] sm:$0xff]
  %v1131 = vld [vmem:[%s3 + $0xf8] sm:$0xff]
  %v1132 = vld [vmem:[%s3 + $0x100] sm:$0xff]
  %v1133 = vld [vmem:[%s3 + $0x108] sm:$0xff]
  %v1134 = vld [vmem:[%s3 + $0x110] sm:$0xff]
  %v1135 = vld [vmem:[%s3 + $0x118] sm:$0xff]
  %v1136 = vld [vmem:[%s3 + $0x120] sm:$0xff]
  %v1137 = vld [vmem:[%s3 + $0x128] sm:$0xff]
  %v1138 = vld [vmem:[%s3 + $0x130] sm:$0xff]
  %v1139 = vld [vmem:[%s3 + $0x138] sm:$0xff]
  %v1140 = vld [vmem:[%s3 + $0x140] sm:$0xff]
  %v1141 = vld [vmem:[%s3 + $0x148] sm:$0xff]
  %v1142 = vld [vmem:[%s3 + $0x150] sm:$0xff]
  %v1143 = vld [vmem:[%s3 + $0x158] sm:$0xff]
  %v1144 = vld [vmem:[%s3 + $0x160] sm:$0xff]
  %v1145 = vld [vmem:[%s3 + $0x168] sm:$0xff]
  %v1146 = vld [vmem:[%s3 + $0x170] sm:$0xff]
  %v1147 = vld [vmem:[%s3 + $0x178] sm:$0xff]
  %v1148 = vld [vmem:[%s3 + $0x180] sm:$0xff]
  %v1149 = vld [vmem:[%s3 + $0x188] sm:$0xff]
  %v1150 = vld [vmem:[%s3 + $0x190] sm:$0xff]
  %v1151 = vld [vmem:[%s3 + $0x198] sm:$0xff]
  %v1152 = vld [vmem:[%s3 + $0x1a0] sm:$0xff]
  %v1153 = vld [vmem:[%s3 + $0x1a8] sm:$0xff]
  %v1154 = vld [vmem:[%s3 + $0x1b0] sm:$0xff]
  %v1155 = vld [vmem:[%s3 + $0x1b8] sm:$0xff]
  %v1156 = vld [vmem:[%s3 + $0x1c0] sm:$0xff]
  %v1157 = vld [vmem:[%s3 + $0x1c8] sm:$0xff]
  %v1158 = vld [vmem:[%s3 + $0x1d0] sm:$0xff]
  %v1159 = vld [vmem:[%s3 + $0x1d8] sm:$0xff]
  %v1160 = vld [vmem:[%s3 + $0x1e0] sm:$0xff]
  %v1161 = vld [vmem:[%s3 + $0x1e8] sm:$0xff]
  %v1162 = vld [vmem:[%s3 + $0x1f0] sm:$0xff]
  %v1163 = vld [vmem:[%s3 + $0x1f8] sm:$0xff]
  %v1164 = vld [vmem:[%s3 + $0x200] sm:$0xff]
  %v1165 = vld [vmem:[%s3 + $0x208] sm:$0xff]
  %v1166 = vld [vmem:[%s3 + $0x210] sm:$0xff]
  %v1167 = vld [vmem:[%s3 + $0x218] sm:$0xff]
  %v1168 = vld [vmem:[%s3 + $0x220] sm:$0xff]
  %v1169 = vld [vmem:[%s3 + $0x228] sm:$0xff]
  %v1170 = vld [vmem:[%s3 + $0x230] sm:$0xff]
  %v1171 = vld [vmem:[%s3 + $0x238] sm:$0xff]
  %v1172 = vld [vmem:[%s3 + $0x240] sm:$0xff]
  %v1173 = vld [vmem:[%s3 + $0x248] sm:$0xff]
  %v1174 = vld [vmem:[%s3 + $0x250] sm:$0xff]
  %v1175 = vld [vmem:[%s3 + $0x258] sm:$0xff]
  %v1176 = vld [vmem:[%s3 + $0x260] sm:$0xff]
  %v1177 = vld [vmem:[%s3 + $0x268] sm:$0xff]
  %v1178 = vld [vmem:[%s3 + $0x270] sm:$0xff]
  %v1179 = vld [vmem:[%s3 + $0x278] sm:$0xff]
  %v1180 = vld [vmem:[%s3 + $0x280] sm:$0xff]
  %v1181 = vld [vmem:[%s3 + $0x288] sm:$0xff]
  %v1182 = vld [vmem:[%s3 + $0x290] sm:$0xff]
  %v1183 = vld [vmem:[%s3 + $0x298] sm:$0xff]
  %v1184 = vld [vmem:[%s3 + $0x2a0] sm:$0xff]
  %v1185 = vld [vmem:[%s3 + $0x2a8] sm:$0xff]
  %v1186 = vld [vmem:[%s3 + $0x2b0] sm:$0xff]
  %v1187 = vld [vmem:[%s3 + $0x2b8] sm:$0xff]
  %v1188 = vld [vmem:[%s3 + $0x2c0] sm:$0xff]
  %v1189 = vld [vmem:[%s3 + $0x2c8] sm:$0xff]
  %v1190 = vld [vmem:[%s3 + $0x2d0] sm:$0xff]
  %v1191 = vld [vmem:[%s3 + $0x2d8] sm:$0xff]
  %v1192 = vld [vmem:[%s3 + $0x2e0] sm:$0xff]
  %v1193 = vld [vmem:[%s3 + $0x2e8] sm:$0xff]
  %v1194 = vld [vmem:[%s3 + $0x2f0] sm:$0xff]
  %v1195 = vld [vmem:[%s3 + $0x2f8] sm:$0xff]
  %v1196 = vld [vmem:[%s3 + $0x300] sm:$0xff]
  %v1197 = vld [vmem:[%s3 + $0x308] sm:$0xff]
  %v1198 = vld [vmem:[%s3 + $0x310] sm:$0xff]
  %v1199 = vld [vmem:[%s3 + $0x318] sm:$0xff]
  %v1200 = vld [vmem:[%s3 + $0x320] sm:$0xff]
  %v1201 = vld [vmem:[%s3 + $0x328] sm:$0xff]
  %v1202 = vld [vmem:[%s3 + $0x330] sm:$0xff]
  %v1203 = vld [vmem:[%s3 + $0x338] sm:$0xff]
  %v1204 = vld [vmem:[%s3 + $0x340] sm:$0xff]
  %v1205 = vld [vmem:[%s3 + $0x348] sm:$0xff]
  %v1206 = vld [vmem:[%s3 + $0x350] sm:$0xff]
  %v1207 = vld [vmem:[%s3 + $0x358] sm:$0xff]
  %v1208 = vld [vmem:[%s3 + $0x360] sm:$0xff]
  %v1209 = vld [vmem:[%s3 + $0x368] sm:$0xff]
  %v1210 = vld [vmem:[%s3 + $0x370] sm:$0xff]
  %v1211 = vld [vmem:[%s3 + $0x378] sm:$0xff]
  %v1212 = vld [vmem:[%s3 + $0x380] sm:$0xff]
  %v1213 = vld [vmem:[%s3 + $0x388] sm:$0xff]
  %v1214 = vld [vmem:[%s3 + $0x390] sm:$0xff]
  %v1215 = vld [vmem:[%s3 + $0x398] sm:$0xff]
  %v1216 = vld [vmem:[%s3 + $0x3a0] sm:$0xff]
  %v1217 = vld [vmem:[%s3 + $0x3a8] sm:$0xff]
  %v1218 = vld [vmem:[%s3 + $0x3b0] sm:$0xff]
  %v1219 = vld [vmem:[%s3 + $0x3b8] sm:$0xff]
  %v1220 = vld [vmem:[%s3 + $0x3c0] sm:$0xff]
  %v1221 = vld [vmem:[%s3 + $0x3c8] sm:$0xff]
  %v1222 = vld [vmem:[%s3 + $0x3d0] sm:$0xff]
  %v1223 = vld [vmem:[%s3 + $0x3d8] sm:$0xff]
  %v1224 = vld [vmem:[%s3 + $0x3e0] sm:$0xff]
  %v1225 = vld [vmem:[%s3 + $0x3e8] sm:$0xff]
  %v1226 = vld [vmem:[%s3 + $0x3f0] sm:$0xff]
  %v1227 = vld [vmem:[%s3 + $0x3f8] sm:$0xff]
  %v1228 = vld [vmem:[%s4] sm:$0x1]
  %v1230 = vlaneseq
  %v1231 = vshrl.u32 %v1230, 7
  %v1232 = vsub.s32 0, %v1231
  %v1233 = vrot.slane %v1228, %v1232
  %1235 = vmatprep.subr.mxu0 0.0
  %1236 = vmatpush1.msra.mxu0 %v1115
  %1237 = vmatprep.subr.mxu0 0.0
  %1238 = vmatpush1.msra.mxu0 %v1114
  %1239 = vmatprep.subr.mxu0 0.0
  %1240 = vmatpush1.msra.mxu0 %v1113
  %1241 = vmatprep.subr.mxu0 0.0
  %1242 = vmatpush1.msra.mxu0 %v1112
  %1243 = vmatprep.subr.mxu0 0.0
  %1244 = vmatpush1.msra.mxu0 %v1111
  %1245 = vmatprep.subr.mxu0 0.0
  %1246 = vmatpush1.msra.mxu0 %v1110
  %1247 = vmatprep.subr.mxu0 0.0
  %1248 = vmatpush1.msra.mxu0 %v1109
  %1249 = vmatprep.subr.mxu0 0.0
  %1250 = vmatpush1.msra.mxu0 %v1108
  %1251 = vmatprep.subr.mxu0 0.0
  %1252 = vmatpush1.msra.mxu0 %v1107
  %1253 = vmatprep.subr.mxu0 0.0
  %1254 = vmatpush1.msra.mxu0 %v1106
  %1255 = vmatprep.subr.mxu0 0.0
  %1256 = vmatpush1.msra.mxu0 %v1105
  %1257 = vmatprep.subr.mxu0 0.0
  %1258 = vmatpush1.msra.mxu0 %v1104
  %1259 = vmatprep.subr.mxu0 0.0
  %1260 = vmatpush1.msra.mxu0 %v1103
  %1261 = vmatprep.subr.mxu0 0.0
  %1262 = vmatpush1.msra.mxu0 %v1102
  %1263 = vmatprep.subr.mxu0 0.0
  %1264 = vmatpush1.msra.mxu0 %v1101
  %1265 = vmatprep.subr.mxu0 0.0
  %1266 = vmatpush1.msra.mxu0 %v1100
  %1267 = vmatprep.subr.mxu0 0.0
  %1268 = vmatpush2.msra.mxu0 %v1131
  %1269 = vmatprep.subr.mxu0 0.0
  %1270 = vmatpush2.msra.mxu0 %v1130
  %1271 = vmatprep.subr.mxu0 0.0
  %1272 = vmatpush2.msra.mxu0 %v1129
  %1273 = vmatprep.subr.mxu0 0.0
  %1274 = vmatpush2.msra.mxu0 %v1128
  %1275 = vmatprep.subr.mxu0 0.0
  %1276 = vmatpush2.msra.mxu0 %v1127
  %1277 = vmatprep.subr.mxu0 0.0
  %1278 = vmatpush2.msra.mxu0 %v1126
  %1279 = vmatprep.subr.mxu0 0.0
  %1280 = vmatpush2.msra.mxu0 %v1125
  %1281 = vmatprep.subr.mxu0 0.0
  %1282 = vmatpush2.msra.mxu0 %v1124
  %1283 = vmatprep.subr.mxu0 0.0
  %1284 = vmatpush2.msra.mxu0 %v1123
  %1285 = vmatprep.subr.mxu0 0.0
  %1286 = vmatpush2.msra.mxu0 %v1122
  %1287 = vmatprep.subr.mxu0 0.0
  %1288 = vmatpush2.msra.mxu0 %v1121
  %1289 = vmatprep.subr.mxu0 0.0
  %1290 = vmatpush2.msra.mxu0 %v1120
  %1291 = vmatprep.subr.mxu0 0.0
  %1292 = vmatpush2.msra.mxu0 %v1119
  %1293 = vmatprep.subr.mxu0 0.0
  %1294 = vmatpush2.msra.mxu0 %v1118
  %1295 = vmatprep.subr.mxu0 0.0
  %1296 = vmatpush2.msra.mxu0 %v1117
  %1297 = vmatprep.subr.mxu0 0.0
  %1298 = vmatpush2.msra.mxu0 %v1116
  %1299 = vmatprep.mubr.f32.mxu0 %v1093
  %1300 = vmatmul.mubr.f32.gmra.mxu0 %v1092
  %v1301 = vpop.f32.mrf.mxu0
  %v1302 = vadd.f32 %v1233, %v1301
  %v1303 = vpop.f32.mrf.mxu0
  %1304 = vdwg.mxu0
  %1305 = vmatprep.subr.mxu0 0.0
  %1306 = vmatpush1.msra.mxu0 %v1147
  %1307 = vmatprep.subr.mxu0 0.0
  %1308 = vmatpush1.msra.mxu0 %v1146
  %1309 = vmatprep.subr.mxu0 0.0
  %1310 = vmatpush1.msra.mxu0 %v1145
  %1311 = vmatprep.subr.mxu0 0.0
  %1312 = vmatpush1.msra.mxu0 %v1144
  %1313 = vmatprep.subr.mxu0 0.0
  %1314 = vmatpush1.msra.mxu0 %v1143
  %1315 = vmatprep.subr.mxu0 0.0
  %1316 = vmatpush1.msra.mxu0 %v1142
  %1317 = vmatprep.subr.mxu0 0.0
  %1318 = vmatpush1.msra.mxu0 %v1141
  %1319 = vmatprep.subr.mxu0 0.0
  %1320 = vmatpush1.msra.mxu0 %v1140
  %1321 = vmatprep.subr.mxu0 0.0
  %1322 = vmatpush1.msra.mxu0 %v1139
  %1323 = vmatprep.subr.mxu0 0.0
  %1324 = vmatpush1.msra.mxu0 %v1138
  %1325 = vmatprep.subr.mxu0 0.0
  %1326 = vmatpush1.msra.mxu0 %v1137
  %1327 = vmatprep.subr.mxu0 0.0
  %1328 = vmatpush1.msra.mxu0 %v1136
  %1329 = vmatprep.subr.mxu0 0.0
  %1330 = vmatpush1.msra.mxu0 %v1135
  %1331 = vmatprep.subr.mxu0 0.0
  %1332 = vmatpush1.msra.mxu0 %v1134
  %1333 = vmatprep.subr.mxu0 0.0
  %1334 = vmatpush1.msra.mxu0 %v1133
  %1335 = vmatprep.subr.mxu0 0.0
  %1336 = vmatpush1.msra.mxu0 %v1132
  %1337 = vmatprep.subr.mxu0 0.0
  %1338 = vmatpush2.msra.mxu0 %v1163
  %1339 = vmatprep.subr.mxu0 0.0
  %1340 = vmatpush2.msra.mxu0 %v1162
  %1341 = vmatprep.subr.mxu0 0.0
  %1342 = vmatpush2.msra.mxu0 %v1161
  %1343 = vmatprep.subr.mxu0 0.0
  %1344 = vmatpush2.msra.mxu0 %v1160
  %1345 = vmatprep.subr.mxu0 0.0
  %1346 = vmatpush2.msra.mxu0 %v1159
  %1347 = vmatprep.subr.mxu0 0.0
  %1348 = vmatpush2.msra.mxu0 %v1158
  %1349 = vmatprep.subr.mxu0 0.0
  %1350 = vmatpush2.msra.mxu0 %v1157
  %1351 = vmatprep.subr.mxu0 0.0
  %1352 = vmatpush2.msra.mxu0 %v1156
  %1353 = vmatprep.subr.mxu0 0.0
  %1354 = vmatpush2.msra.mxu0 %v1155
  %1355 = vmatprep.subr.mxu0 0.0
  %1356 = vmatpush2.msra.mxu0 %v1154
  %1357 = vmatprep.subr.mxu0 0.0
  %1358 = vmatpush2.msra.mxu0 %v1153
  %1359 = vmatprep.subr.mxu0 0.0
  %1360 = vmatpush2.msra.mxu0 %v1152
  %1361 = vmatprep.subr.mxu0 0.0
  %1362 = vmatpush2.msra.mxu0 %v1151
  %1363 = vmatprep.subr.mxu0 0.0
  %1364 = vmatpush2.msra.mxu0 %v1150
  %1365 = vmatprep.subr.mxu0 0.0
  %1366 = vmatpush2.msra.mxu0 %v1149
  %1367 = vmatprep.subr.mxu0 0.0
  %1368 = vmatpush2.msra.mxu0 %v1148
  %1369 = vmatprep.mubr.f32.mxu0 %v1095
  %1370 = vmatmul.mubr.f32.gmra.mxu0 %v1094
  %v1371 = vpop.f32.mrf.mxu0
  %v1372 = vadd.f32 %v1302, %v1371
  %v1373 = vpop.f32.mrf.mxu0
  %1374 = vdwg.mxu0
  %1375 = vmatprep.subr.mxu0 0.0
  %1376 = vmatpush1.msra.mxu0 %v1179
  %1377 = vmatprep.subr.mxu0 0.0
  %1378 = vmatpush1.msra.mxu0 %v1178
  %1379 = vmatprep.subr.mxu0 0.0
  %1380 = vmatpush1.msra.mxu0 %v1177
  %1381 = vmatprep.subr.mxu0 0.0
  %1382 = vmatpush1.msra.mxu0 %v1176
  %1383 = vmatprep.subr.mxu0 0.0
  %1384 = vmatpush1.msra.mxu0 %v1175
  %1385 = vmatprep.subr.mxu0 0.0
  %1386 = vmatpush1.msra.mxu0 %v1174
  %1387 = vmatprep.subr.mxu0 0.0
  %1388 = vmatpush1.msra.mxu0 %v1173
  %1389 = vmatprep.subr.mxu0 0.0
  %1390 = vmatpush1.msra.mxu0 %v1172
  %1391 = vmatprep.subr.mxu0 0.0
  %1392 = vmatpush1.msra.mxu0 %v1171
  %1393 = vmatprep.subr.mxu0 0.0
  %1394 = vmatpush1.msra.mxu0 %v1170
  %1395 = vmatprep.subr.mxu0 0.0
  %1396 = vmatpush1.msra.mxu0 %v1169
  %1397 = vmatprep.subr.mxu0 0.0
  %1398 = vmatpush1.msra.mxu0 %v1168
  %1399 = vmatprep.subr.mxu0 0.0
  %1400 = vmatpush1.msra.mxu0 %v1167
  %1401 = vmatprep.subr.mxu0 0.0
  %1402 = vmatpush1.msra.mxu0 %v1166
  %1403 = vmatprep.subr.mxu0 0.0
  %1404 = vmatpush1.msra.mxu0 %v1165
  %1405 = vmatprep.subr.mxu0 0.0
  %1406 = vmatpush1.msra.mxu0 %v1164
  %1407 = vmatprep.subr.mxu0 0.0
  %1408 = vmatpush2.msra.mxu0 %v1195
  %1409 = vmatprep.subr.mxu0 0.0
  %1410 = vmatpush2.msra.mxu0 %v1194
  %1411 = vmatprep.subr.mxu0 0.0
  %1412 = vmatpush2.msra.mxu0 %v1193
  %1413 = vmatprep.subr.mxu0 0.0
  %1414 = vmatpush2.msra.mxu0 %v1192
  %1415 = vmatprep.subr.mxu0 0.0
  %1416 = vmatpush2.msra.mxu0 %v1191
  %1417 = vmatprep.subr.mxu0 0.0
  %1418 = vmatpush2.msra.mxu0 %v1190
  %1419 = vmatprep.subr.mxu0 0.0
  %1420 = vmatpush2.msra.mxu0 %v1189
  %1421 = vmatprep.subr.mxu0 0.0
  %1422 = vmatpush2.msra.mxu0 %v1188
  %1423 = vmatprep.subr.mxu0 0.0
  %1424 = vmatpush2.msra.mxu0 %v1187
  %1425 = vmatprep.subr.mxu0 0.0
  %1426 = vmatpush2.msra.mxu0 %v1186
  %1427 = vmatprep.subr.mxu0 0.0
  %1428 = vmatpush2.msra.mxu0 %v1185
  %1429 = vmatprep.subr.mxu0 0.0
  %1430 = vmatpush2.msra.mxu0 %v1184
  %1431 = vmatprep.subr.mxu0 0.0
  %1432 = vmatpush2.msra.mxu0 %v1183
  %1433 = vmatprep.subr.mxu0 0.0
  %1434 = vmatpush2.msra.mxu0 %v1182
  %1435 = vmatprep.subr.mxu0 0.0
  %1436 = vmatpush2.msra.mxu0 %v1181
  %1437 = vmatprep.subr.mxu0 0.0
  %1438 = vmatpush2.msra.mxu0 %v1180
  %1439 = vmatprep.mubr.f32.mxu0 %v1097
  %1440 = vmatmul.mubr.f32.gmra.mxu0 %v1096
  %v1441 = vpop.f32.mrf.mxu0
  %v1442 = vadd.f32 %v1372, %v1441
  %v1443 = vpop.f32.mrf.mxu0
  %1444 = vdwg.mxu0
  %1445 = vmatprep.subr.mxu0 0.0
  %1446 = vmatpush1.msra.mxu0 %v1211
  %1447 = vmatprep.subr.mxu0 0.0
  %1448 = vmatpush1.msra.mxu0 %v1210
  %1449 = vmatprep.subr.mxu0 0.0
  %1450 = vmatpush1.msra.mxu0 %v1209
  %1451 = vmatprep.subr.mxu0 0.0
  %1452 = vmatpush1.msra.mxu0 %v1208
  %1453 = vmatprep.subr.mxu0 0.0
  %1454 = vmatpush1.msra.mxu0 %v1207
  %1455 = vmatprep.subr.mxu0 0.0
  %1456 = vmatpush1.msra.mxu0 %v1206
  %1457 = vmatprep.subr.mxu0 0.0
  %1458 = vmatpush1.msra.mxu0 %v1205
  %1459 = vmatprep.subr.mxu0 0.0
  %1460 = vmatpush1.msra.mxu0 %v1204
  %1461 = vmatprep.subr.mxu0 0.0
  %1462 = vmatpush1.msra.mxu0 %v1203
  %1463 = vmatprep.subr.mxu0 0.0
  %1464 = vmatpush1.msra.mxu0 %v1202
  %1465 = vmatprep.subr.mxu0 0.0
  %1466 = vmatpush1.msra.mxu0 %v1201
  %1467 = vmatprep.subr.mxu0 0.0
  %1468 = vmatpush1.msra.mxu0 %v1200
  %1469 = vmatprep.subr.mxu0 0.0
  %1470 = vmatpush1.msra.mxu0 %v1199
  %1471 = vmatprep.subr.mxu0 0.0
  %1472 = vmatpush1.msra.mxu0 %v1198
  %1473 = vmatprep.subr.mxu0 0.0
  %1474 = vmatpush1.msra.mxu0 %v1197
  %1475 = vmatprep.subr.mxu0 0.0
  %1476 = vmatpush1.msra.mxu0 %v1196
  %1477 = vmatprep.subr.mxu0 0.0
  %1478 = vmatpush2.msra.mxu0 %v1227
  %1479 = vmatprep.subr.mxu0 0.0
  %1480 = vmatpush2.msra.mxu0 %v1226
  %1481 = vmatprep.subr.mxu0 0.0
  %1482 = vmatpush2.msra.mxu0 %v1225
  %1483 = vmatprep.subr.mxu0 0.0
  %1484 = vmatpush2.msra.mxu0 %v1224
  %1485 = vmatprep.subr.mxu0 0.0
  %1486 = vmatpush2.msra.mxu0 %v1223
  %1487 = vmatprep.subr.mxu0 0.0
  %1488 = vmatpush2.msra.mxu0 %v1222
  %1489 = vmatprep.subr.mxu0 0.0
  %1490 = vmatpush2.msra.mxu0 %v1221
  %1491 = vmatprep.subr.mxu0 0.0
  %1492 = vmatpush2.msra.mxu0 %v1220
  %1493 = vmatprep.subr.mxu0 0.0
  %1494 = vmatpush2.msra.mxu0 %v1219
  %1495 = vmatprep.subr.mxu0 0.0
  %1496 = vmatpush2.msra.mxu0 %v1218
  %1497 = vmatprep.subr.mxu0 0.0
  %1498 = vmatpush2.msra.mxu0 %v1217
  %1499 = vmatprep.subr.mxu0 0.0
  %1500 = vmatpush2.msra.mxu0 %v1216
  %1501 = vmatprep.subr.mxu0 0.0
  %1502 = vmatpush2.msra.mxu0 %v1215
  %1503 = vmatprep.subr.mxu0 0.0
  %1504 = vmatpush2.msra.mxu0 %v1214
  %1505 = vmatprep.subr.mxu0 0.0
  %1506 = vmatpush2.msra.mxu0 %v1213
  %1507 = vmatprep.subr.mxu0 0.0
  %1508 = vmatpush2.msra.mxu0 %v1212
  %1509 = vmatprep.mubr.f32.mxu0 %v1099
  %1510 = vmatmul.mubr.f32.gmra.mxu0 %v1098
  %v1511 = vpop.f32.mrf.mxu0
  %v1512 = vadd.f32 %v1442, %v1511
  %v1513 = vpop.f32.mrf.mxu0
  %1514 = vdwg.mxu0
  %v1515 = vxor.u32 %v1512, 2147483648
  %v1516 = vmul.f32 %v1515, 1.442695
  %v1517 = vpow.pop %v1516
  %v1518 = vadd.f32 %v1517, 1.0
  %v1519 = vrcp.pop %v1518
  %v1520 = vmul.f32 1.0, %v1519
  %v1521 = vsub.f32 1.0, %v1520
  %v1522 = vmul.f32 %v1512, %v1521
  %v1523 = vadd.f32 %v1522, 1.0
  %v1524 = vmul.f32 %v1520, %v1523
  %v1525 = vld [vmem:[%s5] sm:$0xff]
  %v1526 = vld [vmem:[%s5 + $0x8] sm:$0xff]
  %v1527 = vld [vmem:[%s5 + $0x10] sm:$0xff]
  %v1528 = vld [vmem:[%s5 + $0x18] sm:$0xff]
  %v1529 = vld [vmem:[%s5 + $0x20] sm:$0xff]
  %v1530 = vld [vmem:[%s5 + $0x28] sm:$0xff]
  %v1531 = vld [vmem:[%s5 + $0x30] sm:$0xff]
  %v1532 = vld [vmem:[%s5 + $0x38] sm:$0xff]
  %v1533 = vld [vmem:[%s5 + $0x40] sm:$0xff]
  %v1534 = vld [vmem:[%s5 + $0x48] sm:$0xff]
  %v1535 = vld [vmem:[%s5 + $0x50] sm:$0xff]
  %v1536 = vld [vmem:[%s5 + $0x58] sm:$0xff]
  %v1537 = vld [vmem:[%s5 + $0x60] sm:$0xff]
  %v1538 = vld [vmem:[%s5 + $0x68] sm:$0xff]
  %v1539 = vld [vmem:[%s5 + $0x70] sm:$0xff]
  %v1540 = vld [vmem:[%s5 + $0x78] sm:$0xff]
  %v1541 = vld [vmem:[%s6] sm:$0x1]
  %v1543 = vlaneseq
  %v1544 = vshrl.u32 %v1543, 7
  %v1545 = vsub.s32 0, %v1544
  %v1546 = vrot.slane %v1541, %v1545
  %1548 = vmatprep.subr.mxu0 0.0
  %1549 = vmatpush1.msra.mxu0 %v1540
  %1550 = vmatprep.subr.mxu0 0.0
  %1551 = vmatpush1.msra.mxu0 %v1539
  %1552 = vmatprep.subr.mxu0 0.0
  %1553 = vmatpush1.msra.mxu0 %v1538
  %1554 = vmatprep.subr.mxu0 0.0
  %1555 = vmatpush1.msra.mxu0 %v1537
  %1556 = vmatprep.subr.mxu0 0.0
  %1557 = vmatpush1.msra.mxu0 %v1536
  %1558 = vmatprep.subr.mxu0 0.0
  %1559 = vmatpush1.msra.mxu0 %v1535
  %1560 = vmatprep.subr.mxu0 0.0
  %1561 = vmatpush1.msra.mxu0 %v1534
  %1562 = vmatprep.subr.mxu0 0.0
  %1563 = vmatpush1.msra.mxu0 %v1533
  %1564 = vmatprep.subr.mxu0 0.0
  %1565 = vmatpush1.msra.mxu0 %v1532
  %1566 = vmatprep.subr.mxu0 0.0
  %1567 = vmatpush1.msra.mxu0 %v1531
  %1568 = vmatprep.subr.mxu0 0.0
  %1569 = vmatpush1.msra.mxu0 %v1530
  %1570 = vmatprep.subr.mxu0 0.0
  %1571 = vmatpush1.msra.mxu0 %v1529
  %1572 = vmatprep.subr.mxu0 0.0
  %1573 = vmatpush1.msra.mxu0 %v1528
  %1574 = vmatprep.subr.mxu0 0.0
  %1575 = vmatpush1.msra.mxu0 %v1527
  %1576 = vmatprep.subr.mxu0 0.0
  %1577 = vmatpush1.msra.mxu0 %v1526
  %1578 = vmatprep.subr.mxu0 0.0
  %1579 = vmatpush1.msra.mxu0 %v1525
  %1580 = vmatprep.subr.mxu0 0.0
  %1581 = vmatpush2.msra.mxu0 0.0
  %1582 = vmatprep.subr.mxu0 0.0
  %1583 = vmatpush2.msra.mxu0 0.0
  %1584 = vmatprep.subr.mxu0 0.0
  %1585 = vmatpush2.msra.mxu0 0.0
  %1586 = vmatprep.subr.mxu0 0.0
  %1587 = vmatpush2.msra.mxu0 0.0
  %1588 = vmatprep.subr.mxu0 0.0
  %1589 = vmatpush2.msra.mxu0 0.0
  %1590 = vmatprep.subr.mxu0 0.0
  %1591 = vmatpush2.msra.mxu0 0.0
  %1592 = vmatprep.subr.mxu0 0.0
  %1593 = vmatpush2.msra.mxu0 0.0
  %1594 = vmatprep.subr.mxu0 0.0
  %1595 = vmatpush2.msra.mxu0 0.0
  %1596 = vmatprep.subr.mxu0 0.0
  %1597 = vmatpush2.msra.mxu0 0.0
  %1598 = vmatprep.subr.mxu0 0.0
  %1599 = vmatpush2.msra.mxu0 0.0
  %1600 = vmatprep.subr.mxu0 0.0
  %1601 = vmatpush2.msra.mxu0 0.0
  %1602 = vmatprep.subr.mxu0 0.0
  %1603 = vmatpush2.msra.mxu0 0.0
  %1604 = vmatprep.subr.mxu0 0.0
  %1605 = vmatpush2.msra.mxu0 0.0
  %1606 = vmatprep.subr.mxu0 0.0
  %1607 = vmatpush2.msra.mxu0 0.0
  %1608 = vmatprep.subr.mxu0 0.0
  %1609 = vmatpush2.msra.mxu0 0.0
  %1610 = vmatprep.subr.mxu0 0.0
  %1611 = vmatpush2.msra.mxu0 0.0
  %1612 = vmatprep.mubr.f32.mxu0 0.0
  %1613 = vmatmul.mubr.f32.gmra.mxu0 %v1524
  %v1614 = vpop.f32.mrf.mxu0
  %v1615 = vadd.f32 %v1546, %v1614
  %v1616 = vpop.f32.mrf.mxu0
  %1617 = vdwg.mxu0
  %v1618 = vlaneseq
  %v1619 = vand.u32 %v1618, 127
  %vm1620 = vcmp.lt.s32.totalorder %v1619, 6
  %v1621 = vsel %vm1620, %v1615, -inf
  %1622 = vmax.xlane.f32.xlu0 %v1621
  %v1623 = vpop.xlane.xlu0 %1622
  %v1624 = vsub.f32 %v1621, %v1623
  %v1625 = vmul.f32 %v1624, 1.442695
  %v1626 = vpow.pop %v1625
  %1627 = vadd.xlane.f32.xlu0 %v1626
  %v1628 = vpop.xlane.xlu0 %1627
  %v1629 = vrcp.pop %v1628
  %v1630 = vmul.f32 %v1626, %v1629
  %vm1631 = vcmp.eq.s32.totalorder %v1619, 6
  %v1632 = vsel %vm1631, %v1615, %v1630
  %1633 = vst [vmem:[%s7] sm:$0xff] %v1632
  // Predicated region
  $region30: #{ac_network_forward.1} parent=0 // pred_check
    _
  $region31: #{ac_network_forward.1} parent=0 // pred_check_branch
    %1635 = sbr.rel (0) target = $region33
  $region32: #{ac_network_forward.1} parent=0 // pred_region
    _
  $region33: #{ac_network_forward.1} parent=0 // pred_fallthru
    _
  // Predicated region
  $region34: #{ac_network_forward.1} parent=0 // pred_check
    _
  $region35: #{ac_network_forward.1} parent=0 // pred_check_branch
    %1637 = sbr.rel (0) target = $region37
  $region36: #{ac_network_forward.1} parent=0 // pred_region
    _
  $region37: #{ac_network_forward.1} parent=0 // pred_fallthru
    _

</llo_original>
